<compile_context>
chip_gen: v7x
topology: tpu7x:2x2x1
jax: 0.10.0
libtpu: 0.0.40
codegen_flags: <defaults>
</compile_context>

<pallas_src>
import functools

import jax
import jax.numpy as jnp
import numpy as np
from jax.experimental import pallas as pl
from jax.experimental.pallas import tpu as pltpu


def _round_up(a, m):
    return (a + m - 1) // m * m


def _vmem_capacity_bytes():
    try:
        return int(pltpu.get_tpu_info().vmem_capacity_bytes)
    except Exception:
        return 64 << 20  # conservative default (v7x per-core VMEM)


def _fused_cutoff(vmem_cap, c2, layers, cap=4096):
    """Largest padded node count for which the fully fused path fits VMEM."""
    budget = int(vmem_cap * 0.45)
    best = 0
    n = 128
    while n <= cap:
        est = (2 * n * n                                 # adj bf16 (single-buffered)
               + n * (c2 // 2) * 2                       # h0 bf16
               + 4 * n * c2 * 4                          # f32 out + temporaries
               + 2 * n * c2 * 2                          # bf16 cast temps
               + max(layers - 1, 1) * c2 * c2 * 2        # block-diag weights
               + (c2 // 2) * c2 * 2)                     # layer-0 weight
        if est <= budget:
            best = n
        n += 128
    return max(best, 512)


# ----------------------------------------------------------------------------
# Fully fused kernel: all layers + both heads, whole arrays resident in VMEM.
# ----------------------------------------------------------------------------
def _gin_fused_kernel(adj_ref, h0_ref, w0_ref, b0_ref, w_ref, b_ref, o_ref, *,
                      layers):
    adj = adj_ref[...]                       # (Np, Np) bf16, loaded once
    h0 = h0_ref[...]                         # (Np, cpad) bf16 (single copy of x)

    # layer 0: de-duplicated — one aggregation, side-by-side [W_mu0 | W_lv0]
    agg = jnp.dot(adj, h0, preferred_element_type=jnp.float32)
    y = jnp.dot(agg.astype(jnp.bfloat16), w0_ref[...],
                preferred_element_type=jnp.float32) + b0_ref[...]
    if layers > 1:
        y = jnp.maximum(y, 0.0)
    h = y                                    # (Np, 2*cpad) f32, [mu | logvar]

    # layers 1..L-1: block-diagonal packed weights keep the heads separate
    for i in range(layers - 1):
        agg = jnp.dot(adj, h.astype(jnp.bfloat16),
                      preferred_element_type=jnp.float32)
        y = jnp.dot(agg.astype(jnp.bfloat16), w_ref[i],
                    preferred_element_type=jnp.float32) + b_ref[i]
        if i != layers - 2:                  # ReLU on all but the final layer
            y = jnp.maximum(y, 0.0)
        h = y
    o_ref[...] = h


def _fused_forward(adj_bf16, h0_bf16, w0, b0, w_rest, b_rest, layers, vlimit):
    n_pad = adj_bf16.shape[0]
    c2 = w0.shape[1]
    kernel = functools.partial(_gin_fused_kernel, layers=layers)
    vmem_spec = pl.BlockSpec(memory_space=pltpu.MemorySpace.VMEM)
    return pl.pallas_call(
        kernel,
        out_shape=jax.ShapeDtypeStruct((n_pad, c2), jnp.float32),
        in_specs=[vmem_spec] * 6,
        out_specs=vmem_spec,
        compiler_params=pltpu.CompilerParams(vmem_limit_bytes=vlimit),
    )(adj_bf16, h0_bf16, w0, b0, w_rest, b_rest)


# ----------------------------------------------------------------------------
# Tiled per-layer kernel (large graphs): adjacency streams through VMEM,
# h / W / b fully resident, f32 accumulator, fused linear+bias+ReLU epilogue.
# ----------------------------------------------------------------------------
def _gin_layer_tiled_kernel(adj_ref, h_ref, w_ref, b_ref, o_ref, acc_ref, *,
                            apply_relu, tk):
    k = pl.program_id(1)

    @pl.when(k == 0)
    def _():
        acc_ref[...] = jnp.zeros_like(acc_ref)

    start = pl.multiple_of(k * tk, tk)
    h_blk = h_ref[pl.ds(start, tk), :]                    # resident h, sliced
    acc_ref[...] += jnp.dot(adj_ref[...], h_blk,
                            preferred_element_type=jnp.float32)

    @pl.when(k == pl.num_programs(1) - 1)
    def _():
        y = jnp.dot(acc_ref[...].astype(jnp.bfloat16), w_ref[...],
                    preferred_element_type=jnp.float32) + b_ref[...]
        if apply_relu:
            y = jnp.maximum(y, 0.0)
        o_ref[...] = y.astype(o_ref.dtype)


def _gin_layer_tiled(adj_bf16, h_bf16, w_bf16, b, *, apply_relu, tm, tk,
                     out_dtype, vlimit):
    n_pad = adj_bf16.shape[0]
    c_in = h_bf16.shape[1]
    c_out = w_bf16.shape[1]
    kernel = functools.partial(_gin_layer_tiled_kernel, apply_relu=apply_relu,
                               tk=tk)
    return pl.pallas_call(
        kernel,
        out_shape=jax.ShapeDtypeStruct((n_pad, c_out), out_dtype),
        grid_spec=pltpu.PrefetchScalarGridSpec(
            num_scalar_prefetch=0,
            grid=(n_pad // tm, n_pad // tk),
            in_specs=[
                pl.BlockSpec((tm, tk), lambda i, k: (i, k)),       # adj tile
                pl.BlockSpec((n_pad, c_in), lambda i, k: (0, 0)),  # h resident
                pl.BlockSpec((c_in, c_out), lambda i, k: (0, 0)),  # W resident
                pl.BlockSpec((1, c_out), lambda i, k: (0, 0)),     # b resident
            ],
            out_specs=pl.BlockSpec((tm, c_out), lambda i, k: (i, 0)),
            scratch_shapes=[pltpu.VMEM((tm, c_in), jnp.float32)],
        ),
        compiler_params=pltpu.CompilerParams(
            dimension_semantics=("parallel", "arbitrary"),
            vmem_limit_bytes=vlimit),
    )(adj_bf16, h_bf16, w_bf16, b)


def _tiled_forward(adj_bf16, h0_bf16, w0, b0, w_rest, b_rest, layers, tile,
                   vlimit):
    # layer 0 (deduplicated heads: single x copy, side-by-side weight)
    h = _gin_layer_tiled(
        adj_bf16, h0_bf16, w0, b0,
        apply_relu=(layers > 1), tm=tile, tk=tile,
        out_dtype=jnp.bfloat16 if layers > 1 else jnp.float32, vlimit=vlimit)
    for i in range(layers - 1):
        last = (i == layers - 2)
        h = _gin_layer_tiled(
            adj_bf16, h, w_rest[i], b_rest[i],
            apply_relu=not last, tm=tile, tk=tile,
            out_dtype=jnp.float32 if last else jnp.bfloat16, vlimit=vlimit)
    return h


# ----------------------------------------------------------------------------
# Parameter init (PyTorch nn.Linear default: U(-k, k), k = 1/sqrt(fan_in))
# ----------------------------------------------------------------------------
def init_linear(key, in_c, out_c):
    kw, kb = jax.random.split(key)
    bound = 1.0 / np.sqrt(in_c)
    w = jax.random.uniform(kw, (in_c, out_c), jnp.float32, -bound, bound)  # W^T
    b = jax.random.uniform(kb, (1, out_c), jnp.float32, -bound, bound)
    return w, b


def init_multi_gin_encoder(key, in_channels, hidden_channels, out_channels, layers):
    if layers == 0:
        raise Exception("Can't build GNN Module with zero layers.")
    if layers == 1:
        dims = [(in_channels, out_channels)]
    else:
        dims = []
        for i in range(layers):
            if i == 0:
                dims.append((in_channels, hidden_channels))
            elif i == layers - 1:
                dims.append((hidden_channels, out_channels))
            else:
                dims.append((hidden_channels, hidden_channels))
    params_mu, params_logvar = [], []
    for (ci, co) in dims:
        k_mu, k_lv, key = jax.random.split(key, 3)
        params_mu.append(init_linear(k_mu, ci, co))
        params_logvar.append(init_linear(k_lv, ci, co))
    return params_mu, params_logvar


# ----------------------------------------------------------------------------
# Wrapper: pack heads, fold (1+eps)*I into adj (built directly in bf16),
# pick fused vs tiled path from a VMEM-derived cutoff.
# ----------------------------------------------------------------------------
def build_dense_adj(edge_index, num_nodes, n_pad, eps=0.0, dtype=jnp.bfloat16):
    # adj[dst, src] = multiplicity of edge src -> dst; (1+eps)*I folded in.
    # Built directly in bf16 (small integer multiplicities are exact).
    src, dst = edge_index[0], edge_index[1]
    adj = jnp.zeros((n_pad, n_pad), dtype)
    adj = adj.at[dst, src].add(jnp.asarray(1.0, dtype))
    ids = jnp.arange(num_nodes)
    adj = adj.at[ids, ids].add(jnp.asarray(1.0 + eps, dtype))
    return adj


def _pack_params(params_mu, params_logvar, cpad):
    layers = len(params_mu)
    c2 = 2 * cpad
    # layer 0: side-by-side packing [W_mu0 | W_logvar0] (single x copy feeds both)
    (wm0, bm0), (wl0, bl0) = params_mu[0], params_logvar[0]
    ci0, co0 = wm0.shape
    w0 = jnp.zeros((cpad, c2), jnp.float32)
    w0 = w0.at[:ci0, :co0].set(wm0)
    w0 = w0.at[:ci0, cpad:cpad + co0].set(wl0)
    b0 = jnp.zeros((1, c2), jnp.float32)
    b0 = b0.at[0, :co0].set(bm0.reshape(-1))
    b0 = b0.at[0, cpad:cpad + co0].set(bl0.reshape(-1))
    # layers 1..L-1: block-diagonal packing [ W_mu 0 ; 0 W_logvar ]
    n_rest = max(layers - 1, 1)
    w_rest = jnp.zeros((n_rest, c2, c2), jnp.float32)
    b_rest = jnp.zeros((n_rest, 1, c2), jnp.float32)
    for i in range(1, layers):
        (wm, bm), (wl, bl) = params_mu[i], params_logvar[i]
        ci, co = wm.shape
        w_rest = w_rest.at[i - 1, :ci, :co].set(wm)
        w_rest = w_rest.at[i - 1, cpad:cpad + ci, cpad:cpad + co].set(wl)
        b_rest = b_rest.at[i - 1, 0, :co].set(bm.reshape(-1))
        b_rest = b_rest.at[i - 1, 0, cpad:cpad + co].set(bl.reshape(-1))
    return (w0.astype(jnp.bfloat16), b0,
            w_rest.astype(jnp.bfloat16), b_rest)


def multi_gin_encoder_forward(x, edge_index, params_mu, params_logvar, layers,
                              eps=0.0, force_tiled=False, tile=512):
    if layers == 0:
        raise Exception("Can't build GNN Module with zero layers.")
    N, in_c = x.shape
    out_c = params_mu[-1][0].shape[1]
    cmax = max(max(w.shape) for (w, _) in params_mu)
    cpad = _round_up(cmax, 128)              # lane-dense per-head width
    c2 = 2 * cpad                            # packed [mu | logvar] width

    vmem_cap = _vmem_capacity_bytes()
    cutoff = _fused_cutoff(vmem_cap, c2, layers)
    use_fused = (not force_tiled) and _round_up(N, 128) <= cutoff
    n_pad = _round_up(N, 128) if use_fused else _round_up(N, tile)

    adj = build_dense_adj(edge_index, N, n_pad, eps)     # bf16, (1+eps)I folded
    h0 = jnp.zeros((n_pad, cpad), jnp.bfloat16)
    h0 = h0.at[:N, :in_c].set(x.astype(jnp.bfloat16))
    w0, b0, w_rest, b_rest = _pack_params(params_mu, params_logvar, cpad)

    if use_fused:
        vlimit = min(int(vmem_cap * 0.75), 96 << 20)
        out = _fused_forward(adj, h0, w0, b0, w_rest, b_rest, layers, vlimit)
    else:
        vlimit = min(int(vmem_cap * 0.6), 64 << 20)
        out = _tiled_forward(adj, h0, w0, b0, w_rest, b_rest, layers, tile,
                             vlimit)
    mu = out[:N, :out_c].astype(jnp.float32)
    logvar = out[:N, cpad:cpad + out_c].astype(jnp.float32)
    return mu, logvar


# ----------------------------------------------------------------------------
# References.
# ----------------------------------------------------------------------------
def _reference_bf16(x, edge_index, params_mu, params_logvar, layers, eps=0.0):
    """Same math as the kernels (bf16 MXU inputs, f32 accumulation)."""
    N = x.shape[0]
    adj = build_dense_adj(edge_index, N, N, eps)   # (N,N) bf16, (1+eps)I folded

    def head(params):
        h = x.astype(jnp.float32)
        for i, (w, b) in enumerate(params):
            agg = jnp.dot(adj, h.astype(jnp.bfloat16),
                          preferred_element_type=jnp.float32)
            y = jnp.dot(agg.astype(jnp.bfloat16), w.astype(jnp.bfloat16),
                        preferred_element_type=jnp.float32) + b
            h = jnp.maximum(y, 0.0) if (layers > 1 and i != layers - 1) else y
        return h

    return head(params_mu), head(params_logvar)


def _reference_f32(x, edge_index, params_mu, params_logvar, layers, eps=0.0):
    """Exact f32 module semantics."""
    N = x.shape[0]
    src, dst = edge_index[0], edge_index[1]
    adj = jnp.zeros((N, N), jnp.float32).at[dst, src].add(1.0)
    hi = jax.lax.Precision.HIGHEST

    def head(params):
        h = x
        for i, (w, b) in enumerate(params):
            agg = (1.0 + eps) * h + jnp.dot(adj, h, precision=hi)
            y = jnp.dot(agg, w, precision=hi) + b
            h = jnp.maximum(y, 0.0) if (layers > 1 and i != layers - 1) else y
        return h

    return head(params_mu), head(params_logvar)


if __name__ == "__main__":
    in_c, hid_c, out_c, layers = 4, 32, 16, 3
    key = jax.random.PRNGKey(0)
    k_x, k_p, k_x2, k_e2, k_p1 = jax.random.split(key, 5)

    # ---- test 1: small ring graph -> fully fused single-kernel path --------
    N1 = 8
    x1 = jax.random.normal(k_x, (N1, in_c), jnp.float32)
    src = np.concatenate([np.arange(N1), (np.arange(N1) + 1) % N1])
    dst = np.concatenate([(np.arange(N1) + 1) % N1, np.arange(N1)])
    ei1 = jnp.asarray(np.stack([src, dst]), jnp.int32)        # (2, 2*N1)
    params_mu, params_lv = init_multi_gin_encoder(k_p, in_c, hid_c, out_c, layers)

    mu, lv = multi_gin_encoder_forward(x1, ei1, params_mu, params_lv, layers)
    mu, lv = jax.block_until_ready((mu, lv))

    mu_e, lv_e = _reference_bf16(x1, ei1, params_mu, params_lv, layers)
    np.testing.assert_allclose(np.asarray(mu), np.asarray(mu_e), rtol=1e-3, atol=1e-3)
    np.testing.assert_allclose(np.asarray(lv), np.asarray(lv_e), rtol=1e-3, atol=1e-3)
    mu_f, lv_f = _reference_f32(x1, ei1, params_mu, params_lv, layers)
    np.testing.assert_allclose(np.asarray(mu), np.asarray(mu_f), rtol=5e-2, atol=5e-2)
    np.testing.assert_allclose(np.asarray(lv), np.asarray(lv_f), rtol=5e-2, atol=5e-2)

    # ---- test 2: larger random graph -> tiled, pipelined path --------------
    N2, E2 = 700, 2800
    x2 = jax.random.normal(k_x2, (N2, in_c), jnp.float32)
    ei2 = jax.random.randint(k_e2, (2, E2), 0, N2, dtype=jnp.int32)
    mu2, lv2 = multi_gin_encoder_forward(x2, ei2, params_mu, params_lv, layers,
                                         force_tiled=True, tile=512)
    mu2, lv2 = jax.block_until_ready((mu2, lv2))
    mu2_e, lv2_e = _reference_bf16(x2, ei2, params_mu, params_lv, layers)
    np.testing.assert_allclose(np.asarray(mu2), np.asarray(mu2_e), rtol=1e-2, atol=1e-2)
    np.testing.assert_allclose(np.asarray(lv2), np.asarray(lv2_e), rtol=1e-2, atol=1e-2)

    # ---- test 3: single-layer module (layers==1, no ReLU) ------------------
    p1_mu, p1_lv = init_multi_gin_encoder(k_p1, in_c, hid_c, out_c, 1)
    mu3, lv3 = multi_gin_encoder_forward(x1, ei1, p1_mu, p1_lv, 1)
    mu3, lv3 = jax.block_until_ready((mu3, lv3))
    mu3_e, lv3_e = _reference_bf16(x1, ei1, p1_mu, p1_lv, 1)
    np.testing.assert_allclose(np.asarray(mu3), np.asarray(mu3_e), rtol=1e-3, atol=1e-3)
    np.testing.assert_allclose(np.asarray(lv3), np.asarray(lv3_e), rtol=1e-3, atol=1e-3)

    print("KERNEL_OK")
</pallas_src>

<mosaic_0001>
module attributes {stable_mosaic.version = 11 : i64} {
  func.func @_gin_fused_kernel(%arg0: memref<128x128xbf16, #tpu.memory_space<vmem>>, %arg1: memref<128x128xbf16, #tpu.memory_space<vmem>>, %arg2: memref<128x256xbf16, #tpu.memory_space<vmem>>, %arg3: memref<1x256xf32, #tpu.memory_space<vmem>>, %arg4: memref<2x256x256xbf16, #tpu.memory_space<vmem>>, %arg5: memref<2x1x256xf32, #tpu.memory_space<vmem>>, %arg6: memref<128x256xf32, #tpu.memory_space<vmem>>) attributes {dimension_semantics = [], scalar_prefetch = 0 : i64, scratch_operands = 0 : i64, tpu.core_type = #tpu.core_type<tc>} {
    %c0 = arith.constant 0 : index
    %c0_0 = arith.constant 0 : index
    %0 = vector.load %arg0[%c0, %c0_0] : memref<128x128xbf16, #tpu.memory_space<vmem>>, vector<128x128xbf16>
    %c0_1 = arith.constant 0 : index
    %c0_2 = arith.constant 0 : index
    %1 = vector.load %arg1[%c0_1, %c0_2] : memref<128x128xbf16, #tpu.memory_space<vmem>>, vector<128x128xbf16>
    %cst = arith.constant dense<0.000000e+00> : vector<128x128xf32>
    %2 = tpu.matmul %0, %1, %cst {dimension_numbers = #tpu.dot_dimension_numbers<[1], [0], [0], [1], [0, 0, 1, 1], [], []>} : vector<128x128xbf16>, vector<128x128xbf16>, vector<128x128xf32> -> vector<128x128xf32>
    %3 = arith.truncf %2 : vector<128x128xf32> to vector<128x128xbf16>
    %c0_3 = arith.constant 0 : index
    %c0_4 = arith.constant 0 : index
    %4 = vector.load %arg2[%c0_3, %c0_4] : memref<128x256xbf16, #tpu.memory_space<vmem>>, vector<128x256xbf16>
    %cst_5 = arith.constant dense<0.000000e+00> : vector<128x256xf32>
    %5 = tpu.matmul %3, %4, %cst_5 {dimension_numbers = #tpu.dot_dimension_numbers<[1], [0], [0], [1], [0, 0, 1, 1], [], []>} : vector<128x128xbf16>, vector<128x256xbf16>, vector<128x256xf32> -> vector<128x256xf32>
    %c0_6 = arith.constant 0 : index
    %c0_7 = arith.constant 0 : index
    %6 = vector.load %arg3[%c0_6, %c0_7] : memref<1x256xf32, #tpu.memory_space<vmem>>, vector<1x256xf32>
    %7 = vector.broadcast %6 : vector<1x256xf32> to vector<128x256xf32>
    %8 = arith.addf %5, %7 : vector<128x256xf32>
    %cst_8 = arith.constant 0.000000e+00 : f32
    %9 = vector.broadcast %cst_8 : f32 to vector<128x256xf32>
    %10 = arith.maximumf %8, %9 : vector<128x256xf32>
    %11 = arith.truncf %10 : vector<128x256xf32> to vector<128x256xbf16>
    %cst_9 = arith.constant dense<0.000000e+00> : vector<128x256xf32>
    %12 = tpu.matmul %0, %11, %cst_9 {dimension_numbers = #tpu.dot_dimension_numbers<[1], [0], [0], [1], [0, 0, 1, 1], [], []>} : vector<128x128xbf16>, vector<128x256xbf16>, vector<128x256xf32> -> vector<128x256xf32>
    %13 = arith.truncf %12 : vector<128x256xf32> to vector<128x256xbf16>
    %c0_10 = arith.constant 0 : index
    %c0_11 = arith.constant 0 : index
    %c0_12 = arith.constant 0 : index
    %14 = vector.load %arg4[%c0_10, %c0_11, %c0_12] : memref<2x256x256xbf16, #tpu.memory_space<vmem>>, vector<1x256x256xbf16>
    %15 = vector.shape_cast %14 : vector<1x256x256xbf16> to vector<256x256xbf16>
    %cst_13 = arith.constant dense<0.000000e+00> : vector<128x256xf32>
    %16 = tpu.matmul %13, %15, %cst_13 {dimension_numbers = #tpu.dot_dimension_numbers<[1], [0], [0], [1], [0, 0, 1, 1], [], []>} : vector<128x256xbf16>, vector<256x256xbf16>, vector<128x256xf32> -> vector<128x256xf32>
    %c0_14 = arith.constant 0 : index
    %c0_15 = arith.constant 0 : index
    %c0_16 = arith.constant 0 : index
    %17 = vector.load %arg5[%c0_14, %c0_15, %c0_16] : memref<2x1x256xf32, #tpu.memory_space<vmem>>, vector<1x1x256xf32>
    %18 = vector.shape_cast %17 : vector<1x1x256xf32> to vector<1x256xf32>
    %19 = vector.broadcast %18 : vector<1x256xf32> to vector<128x256xf32>
    %20 = arith.addf %16, %19 : vector<128x256xf32>
    %cst_17 = arith.constant 0.000000e+00 : f32
    %21 = vector.broadcast %cst_17 : f32 to vector<128x256xf32>
    %22 = arith.maximumf %20, %21 : vector<128x256xf32>
    %23 = arith.truncf %22 : vector<128x256xf32> to vector<128x256xbf16>
    %cst_18 = arith.constant dense<0.000000e+00> : vector<128x256xf32>
    %24 = tpu.matmul %0, %23, %cst_18 {dimension_numbers = #tpu.dot_dimension_numbers<[1], [0], [0], [1], [0, 0, 1, 1], [], []>} : vector<128x128xbf16>, vector<128x256xbf16>, vector<128x256xf32> -> vector<128x256xf32>
    %25 = arith.truncf %24 : vector<128x256xf32> to vector<128x256xbf16>
    %c1 = arith.constant 1 : index
    %c0_19 = arith.constant 0 : index
    %c0_20 = arith.constant 0 : index
    %26 = vector.load %arg4[%c1, %c0_19, %c0_20] : memref<2x256x256xbf16, #tpu.memory_space<vmem>>, vector<1x256x256xbf16>
    %27 = vector.shape_cast %26 : vector<1x256x256xbf16> to vector<256x256xbf16>
    %cst_21 = arith.constant dense<0.000000e+00> : vector<128x256xf32>
    %28 = tpu.matmul %25, %27, %cst_21 {dimension_numbers = #tpu.dot_dimension_numbers<[1], [0], [0], [1], [0, 0, 1, 1], [], []>} : vector<128x256xbf16>, vector<256x256xbf16>, vector<128x256xf32> -> vector<128x256xf32>
    %c1_22 = arith.constant 1 : index
    %c0_23 = arith.constant 0 : index
    %c0_24 = arith.constant 0 : index
    %29 = vector.load %arg5[%c1_22, %c0_23, %c0_24] : memref<2x1x256xf32, #tpu.memory_space<vmem>>, vector<1x1x256xf32>
    %30 = vector.shape_cast %29 : vector<1x1x256xf32> to vector<1x256xf32>
    %31 = vector.broadcast %30 : vector<1x256xf32> to vector<128x256xf32>
    %32 = arith.addf %28, %31 : vector<128x256xf32>
    %c0_25 = arith.constant 0 : index
    %c0_26 = arith.constant 0 : index
    %33 = vector.load %arg6[%c0_25, %c0_26] : memref<128x256xf32, #tpu.memory_space<vmem>>, vector<128x256xf32>
    tpu.vector_store %arg6[%c0_25, %c0_26], %32 {strides = array<i32>} : memref<128x256xf32, #tpu.memory_space<vmem>>, vector<128x256xf32>,
    return
  }
}

</mosaic_0001>

<llo_original>
// kernel: tpu_custom_call.1
$region0: #{tpu_custom_call.1}
  #allocation0 [shape = 'u32[]', space=smem, size = 0x4, offset = 0x4, fixed_abs, tag = 'smem constant byte address 0x4 - core index']
  #allocation1 [shape = 'u32[144,128]{1,0:T(1,128)}', space=vmem, size = 0x12000, scoped, tag = 'internal scratch']
  %s0 = inlined_call_operand.hbm [shape: bf16[128,128], index: 0, kind: input, shape index: {}]
  %s1 = inlined_call_operand.hbm [shape: bf16[128,128], index: 1, kind: input, shape index: {}]
  %s2 = inlined_call_operand.hbm [shape: bf16[128,256], index: 2, kind: input, shape index: {}]
  %s3 = inlined_call_operand.vmem [shape: f32[1,256], index: 3, kind: input, shape index: {}]
  %s4 = inlined_call_operand.hbm [shape: bf16[2,256,256], index: 4, kind: input, shape index: {}]
  %s5 = inlined_call_operand.vmem [shape: f32[2,1,256], index: 5, kind: input, shape index: {}]
  %s6 = inlined_call_operand.hbm [shape: f32[128,256], index: 6, kind: output, shape index: {}]
  %s7 = sld [smem:[#allocation0]]
  $region50: #{tpu_custom_call.1} parent=0
    _
  %s9 = ssub.s32 1, %s7
  %s10 = scalar_select 0, %s9, %s7
  $region1: #{tpu_custom_call.1} parent=0
    #allocation2 [shape = 'u8[32768]{0}', space=vmem, size = 0x8000, scoped, tag = 'input window, operand 0, single buffered']
    #allocation3 [shape = 's32[1]{0}', space=sflag, size = 0x4, scoped, tag = 'scoped memory for tpu_custom_call.1']
    #allocation4 [shape = 's32[1]{0}', space=sflag, size = 0x4, scoped, tag = 'scoped memory for tpu_custom_call.1']
    #allocation5 [shape = 'u8[32768]{0}', space=vmem, size = 0x8000, scoped, tag = 'input window, operand 1, single buffered']
    #allocation6 [shape = 's32[1]{0}', space=sflag, size = 0x4, scoped, tag = 'scoped memory for tpu_custom_call.1']
    #allocation7 [shape = 'u8[65536]{0}', space=vmem, size = 0x10000, scoped, tag = 'input window, operand 2, single buffered']
    #allocation8 [shape = 'u8[262144]{0}', space=vmem, size = 0x40000, scoped, tag = 'input window, operand 4, single buffered']
    #allocation9 [shape = 's32[1]{0}', space=sflag, size = 0x4, scoped, tag = 'scoped memory for tpu_custom_call.1']
    #allocation10 [shape = 'u8[131072]{0}', space=vmem, size = 0x20000, scoped, tag = 'output window, operand 0, single buffered']
    %11 = vsyncpa [#allocation3], 0
    %12 = vsyncpa [#allocation6], 0
    %13 = vsyncpa [#allocation9], 0
    %14 = vsyncpa [#allocation4], 0
    // Predicated region
    $region2: #{tpu_custom_call.1} parent=1 // pred_check
      _
    $region3: #{tpu_custom_call.1} parent=1 // pred_check_branch
      %16 = sbr.rel (0) target = $region5
    $region4: #{tpu_custom_call.1} parent=1 // pred_region
      %s18 = ssub.s32 1024, 1024
      %19 = vsyncadd [#allocation3], %s18
      %s20 = sshll.u32 [#allocation2], 4
      %s21 = int_to_ptr.vmem [resolvable:$true] %s20
      %26 = dma.hbm_to_vmem [thread:$0]  %s0, 1024, %s21, [#allocation3], 64, 64, 4
    $region5: #{tpu_custom_call.1} parent=1 // pred_fallthru
      _
    // Predicated region
    $region6: #{tpu_custom_call.1} parent=1 // pred_check
      _
    $region7: #{tpu_custom_call.1} parent=1 // pred_check_branch
      %28 = sbr.rel (0) target = $region9
    $region8: #{tpu_custom_call.1} parent=1 // pred_region
      %s30 = ssub.s32 1024, 1024
      %31 = vsyncadd [#allocation6], %s30
      %s32 = sshll.u32 [#allocation5], 4
      %s33 = int_to_ptr.vmem [resolvable:$true] %s32
      %38 = dma.hbm_to_vmem [thread:$0]  %s1, 1024, %s33, [#allocation6], 64, 64, 4
    $region9: #{tpu_custom_call.1} parent=1 // pred_fallthru
      _
    // Predicated region
    $region10: #{tpu_custom_call.1} parent=1 // pred_check
      _
    $region11: #{tpu_custom_call.1} parent=1 // pred_check_branch
      %40 = sbr.rel (0) target = $region13
    $region12: #{tpu_custom_call.1} parent=1 // pred_region
      %s42 = ssub.s32 2048, 2048
      %43 = vsyncadd [#allocation6], %s42
      %s44 = sshll.u32 [#allocation7], 4
      %s45 = int_to_ptr.vmem [resolvable:$true] %s44
      %50 = dma.hbm_to_vmem [thread:$0]  %s2, 2048, %s45, [#allocation6], 128, 128, 8
    $region13: #{tpu_custom_call.1} parent=1 // pred_fallthru
      _
    // Predicated region
    $region14: #{tpu_custom_call.1} parent=1 // pred_check
      _
    $region15: #{tpu_custom_call.1} parent=1 // pred_check_branch
      %52 = sbr.rel (0) target = $region17
    $region16: #{tpu_custom_call.1} parent=1 // pred_region
      _
    $region17: #{tpu_custom_call.1} parent=1 // pred_fallthru
      _
    // Predicated region
    $region18: #{tpu_custom_call.1} parent=1 // pred_check
      _
    $region19: #{tpu_custom_call.1} parent=1 // pred_check_branch
      %54 = sbr.rel (0) target = $region21
    $region20: #{tpu_custom_call.1} parent=1 // pred_region
      %s56 = ssub.s32 8192, 8192
      %57 = vsyncadd [#allocation9], %s56
      %s58 = sshll.u32 [#allocation8], 4
      %s59 = int_to_ptr.vmem [resolvable:$true] %s58
      %64 = dma.hbm_to_vmem [thread:$0]  %s4, 8192, %s59, [#allocation9], 128, 128, 8
    $region21: #{tpu_custom_call.1} parent=1 // pred_fallthru
      _
    // Predicated region
    $region22: #{tpu_custom_call.1} parent=1 // pred_check
      _
    $region23: #{tpu_custom_call.1} parent=1 // pred_check_branch
      %66 = sbr.rel (0) target = $region25
    $region24: #{tpu_custom_call.1} parent=1 // pred_region
      _
    $region25: #{tpu_custom_call.1} parent=1 // pred_fallthru
      _
    // Predicated region
    $region26: #{tpu_custom_call.1} parent=1 // pred_check
      _
    $region27: #{tpu_custom_call.1} parent=1 // pred_check_branch
      %68 = sbr.rel (0) target = $region29
    $region28: #{tpu_custom_call.1} parent=1 // pred_region
      %69 = dma.done [#allocation3], 1024
    $region29: #{tpu_custom_call.1} parent=1 // pred_fallthru
      _
    // Predicated region
    $region30: #{tpu_custom_call.1} parent=1 // pred_check
      _
    $region31: #{tpu_custom_call.1} parent=1 // pred_check_branch
      %71 = sbr.rel (0) target = $region33
    $region32: #{tpu_custom_call.1} parent=1 // pred_region
      %72 = dma.done [#allocation6], 1024
    $region33: #{tpu_custom_call.1} parent=1 // pred_fallthru
      _
    // Predicated region
    $region34: #{tpu_custom_call.1} parent=1 // pred_check
      _
    $region35: #{tpu_custom_call.1} parent=1 // pred_check_branch
      %74 = sbr.rel (0) target = $region37
    $region36: #{tpu_custom_call.1} parent=1 // pred_region
      %75 = dma.done [#allocation6], 2048
    $region37: #{tpu_custom_call.1} parent=1 // pred_fallthru
      _
    // Predicated region
    $region38: #{tpu_custom_call.1} parent=1 // pred_check
      _
    $region39: #{tpu_custom_call.1} parent=1 // pred_check_branch
      %77 = sbr.rel (0) target = $region41
    $region40: #{tpu_custom_call.1} parent=1 // pred_region
      %78 = dma.done [#allocation9], 8192
    $region41: #{tpu_custom_call.1} parent=1 // pred_fallthru
      _
    %v80 = vld [vmem:[#allocation2] sm:$0xf]
    %v81 = vld [vmem:[#allocation2 + $0x4] sm:$0xf]
    %v82 = vld [vmem:[#allocation2 + $0x8] sm:$0xf]
    %v83 = vld [vmem:[#allocation2 + $0xc] sm:$0xf]
    %v84 = vld [vmem:[#allocation2 + $0x10] sm:$0xf]
    %v85 = vld [vmem:[#allocation2 + $0x14] sm:$0xf]
    %v86 = vld [vmem:[#allocation2 + $0x18] sm:$0xf]
    %v87 = vld [vmem:[#allocation2 + $0x1c] sm:$0xf]
    %v88 = vld [vmem:[#allocation2 + $0x20] sm:$0xf]
    %v89 = vld [vmem:[#allocation2 + $0x24] sm:$0xf]
    %v90 = vld [vmem:[#allocation2 + $0x28] sm:$0xf]
    %v91 = vld [vmem:[#allocation2 + $0x2c] sm:$0xf]
    %v92 = vld [vmem:[#allocation2 + $0x30] sm:$0xf]
    %v93 = vld [vmem:[#allocation2 + $0x34] sm:$0xf]
    %v94 = vld [vmem:[#allocation2 + $0x38] sm:$0xf]
    %v95 = vld [vmem:[#allocation2 + $0x3c] sm:$0xf]
    %v96 = vld [vmem:[#allocation5] sm:$0xf]
    %v97 = vld [vmem:[#allocation5 + $0x4] sm:$0xf]
    %v98 = vld [vmem:[#allocation5 + $0x8] sm:$0xf]
    %v99 = vld [vmem:[#allocation5 + $0xc] sm:$0xf]
    %v100 = vld [vmem:[#allocation5 + $0x10] sm:$0xf]
    %v101 = vld [vmem:[#allocation5 + $0x14] sm:$0xf]
    %v102 = vld [vmem:[#allocation5 + $0x18] sm:$0xf]
    %v103 = vld [vmem:[#allocation5 + $0x1c] sm:$0xf]
    %v104 = vld [vmem:[#allocation5 + $0x20] sm:$0xf]
    %v105 = vld [vmem:[#allocation5 + $0x24] sm:$0xf]
    %v106 = vld [vmem:[#allocation5 + $0x28] sm:$0xf]
    %v107 = vld [vmem:[#allocation5 + $0x2c] sm:$0xf]
    %v108 = vld [vmem:[#allocation5 + $0x30] sm:$0xf]
    %v109 = vld [vmem:[#allocation5 + $0x34] sm:$0xf]
    %v110 = vld [vmem:[#allocation5 + $0x38] sm:$0xf]
    %v111 = vld [vmem:[#allocation5 + $0x3c] sm:$0xf]
    %v128 = vunpack.c.l.b16 %v80
    %v129 = vunpack.c.l.b16 %v81
    %v130 = vunpack.c.l.b16 %v82
    %v131 = vunpack.c.l.b16 %v83
    %v132 = vunpack.c.l.b16 %v84
    %v133 = vunpack.c.l.b16 %v85
    %v134 = vunpack.c.l.b16 %v86
    %v135 = vunpack.c.l.b16 %v87
    %v136 = vunpack.c.l.b16 %v88
    %v137 = vunpack.c.l.b16 %v89
    %v138 = vunpack.c.l.b16 %v90
    %v139 = vunpack.c.l.b16 %v91
    %v140 = vunpack.c.l.b16 %v92
    %v141 = vunpack.c.l.b16 %v93
    %v142 = vunpack.c.l.b16 %v94
    %v143 = vunpack.c.l.b16 %v95
    %v144 = vpack.c.b16 %v129, %v128
    %v145 = vpack.c.b16 %v131, %v130
    %v146 = vpack.c.b16 %v133, %v132
    %v147 = vpack.c.b16 %v135, %v134
    %v148 = vpack.c.b16 %v137, %v136
    %v149 = vpack.c.b16 %v139, %v138
    %v150 = vpack.c.b16 %v141, %v140
    %v151 = vpack.c.b16 %v143, %v142
    %v176 = vunpack.c.l.b16 %v96
    %v177 = vunpack.c.l.b16 %v97
    %v178 = vunpack.c.l.b16 %v98
    %v179 = vunpack.c.l.b16 %v99
    %v180 = vunpack.c.l.b16 %v100
    %v181 = vunpack.c.l.b16 %v101
    %v182 = vunpack.c.l.b16 %v102
    %v183 = vunpack.c.l.b16 %v103
    %v184 = vunpack.c.l.b16 %v104
    %v185 = vunpack.c.l.b16 %v105
    %v186 = vunpack.c.l.b16 %v106
    %v187 = vunpack.c.l.b16 %v107
    %v188 = vunpack.c.l.b16 %v108
    %v189 = vunpack.c.l.b16 %v109
    %v190 = vunpack.c.l.b16 %v110
    %v191 = vunpack.c.l.b16 %v111
    %v192 = vpack.c.b16 %v177, %v176
    %v193 = vpack.c.b16 %v179, %v178
    %v194 = vpack.c.b16 %v181, %v180
    %v195 = vpack.c.b16 %v183, %v182
    %v196 = vpack.c.b16 %v185, %v184
    %v197 = vpack.c.b16 %v187, %v186
    %v198 = vpack.c.b16 %v189, %v188
    %v199 = vpack.c.b16 %v191, %v190
    %208 = vmatprep.subr.bf16.mxu0 0
    %209 = vmatpush1.bf16.msra.mxu0 %v192
    %210 = vmatprep.subr.bf16.mxu0 0
    %211 = vmatpush1.bf16.msra.mxu0 %v193
    %212 = vmatprep.subr.bf16.mxu0 0
    %213 = vmatpush1.bf16.msra.mxu0 %v194
    %214 = vmatprep.subr.bf16.mxu0 0
    %215 = vmatpush1.bf16.msra.mxu0 %v195
    %216 = vmatprep.subr.bf16.mxu0 0
    %217 = vmatpush1.bf16.msra.mxu0 %v196
    %218 = vmatprep.subr.bf16.mxu0 0
    %219 = vmatpush1.bf16.msra.mxu0 %v197
    %220 = vmatprep.subr.bf16.mxu0 0
    %221 = vmatpush1.bf16.msra.mxu0 %v198
    %222 = vmatprep.subr.bf16.mxu0 0
    %223 = vmatpush1.bf16.msra.mxu0 %v199
    %224 = vmatprep.subr.bf16.mxu0 0
    %225 = vmatpush1.bf16.msra.mxu0 0
    %226 = vmatprep.subr.bf16.mxu0 0
    %227 = vmatpush1.bf16.msra.mxu0 0
    %228 = vmatprep.subr.bf16.mxu0 0
    %229 = vmatpush1.bf16.msra.mxu0 0
    %230 = vmatprep.subr.bf16.mxu0 0
    %231 = vmatpush1.bf16.msra.mxu0 0
    %232 = vmatprep.subr.bf16.mxu0 0
    %233 = vmatpush1.bf16.msra.mxu0 0
    %234 = vmatprep.subr.bf16.mxu0 0
    %235 = vmatpush1.bf16.msra.mxu0 0
    %236 = vmatprep.subr.bf16.mxu0 0
    %237 = vmatpush1.bf16.msra.mxu0 0
    %238 = vmatprep.subr.bf16.mxu0 0
    %239 = vmatpush1.bf16.msra.mxu0 0
    %240 = vmatprep.mubr.bf16.mxu0 0
    %241 = vmatmul.mubr.bf16.gmra.mrb[0].mxu0 %v144
    %v242 = vpop.f32.mrb[0].mxu0
    %v243 = vadd.f32 0.0, %v242
    %v244 = vpop.f32.mrb[0].mxu0
    %v245 = vpop.f32.mrb[0].mxu0
    %v246 = vadd.f32 0.0, %v245
    %v247 = vpop.f32.mrb[0].mxu0
    %248 = vmatprep.mubr.bf16.mxu0 0
    %249 = vmatmul.mubr.bf16.gmra.mrb[0].mxu0 %v145
    %v250 = vpop.f32.mrb[0].mxu0
    %v251 = vadd.f32 0.0, %v250
    %v252 = vpop.f32.mrb[0].mxu0
    %v253 = vpop.f32.mrb[0].mxu0
    %v254 = vadd.f32 0.0, %v253
    %v255 = vpop.f32.mrb[0].mxu0
    %256 = vmatprep.mubr.bf16.mxu0 0
    %257 = vmatmul.mubr.bf16.gmra.mrb[0].mxu0 %v146
    %v258 = vpop.f32.mrb[0].mxu0
    %v259 = vadd.f32 0.0, %v258
    %v260 = vpop.f32.mrb[0].mxu0
    %v261 = vpop.f32.mrb[0].mxu0
    %v262 = vadd.f32 0.0, %v261
    %v263 = vpop.f32.mrb[0].mxu0
    %264 = vmatprep.mubr.bf16.mxu0 0
    %265 = vmatmul.mubr.bf16.gmra.mrb[0].mxu0 %v147
    %v266 = vpop.f32.mrb[0].mxu0
    %v267 = vadd.f32 0.0, %v266
    %v268 = vpop.f32.mrb[0].mxu0
    %v269 = vpop.f32.mrb[0].mxu0
    %v270 = vadd.f32 0.0, %v269
    %v271 = vpop.f32.mrb[0].mxu0
    %272 = vmatprep.mubr.bf16.mxu0 0
    %273 = vmatmul.mubr.bf16.gmra.mrb[0].mxu0 %v148
    %v274 = vpop.f32.mrb[0].mxu0
    %v275 = vadd.f32 0.0, %v274
    %v276 = vpop.f32.mrb[0].mxu0
    %v277 = vpop.f32.mrb[0].mxu0
    %v278 = vadd.f32 0.0, %v277
    %v279 = vpop.f32.mrb[0].mxu0
    %280 = vmatprep.mubr.bf16.mxu0 0
    %281 = vmatmul.mubr.bf16.gmra.mrb[0].mxu0 %v149
    %v282 = vpop.f32.mrb[0].mxu0
    %v283 = vadd.f32 0.0, %v282
    %v284 = vpop.f32.mrb[0].mxu0
    %v285 = vpop.f32.mrb[0].mxu0
    %v286 = vadd.f32 0.0, %v285
    %v287 = vpop.f32.mrb[0].mxu0
    %288 = vmatprep.mubr.bf16.mxu0 0
    %289 = vmatmul.mubr.bf16.gmra.mrb[0].mxu0 %v150
    %v290 = vpop.f32.mrb[0].mxu0
    %v291 = vadd.f32 0.0, %v290
    %v292 = vpop.f32.mrb[0].mxu0
    %v293 = vpop.f32.mrb[0].mxu0
    %v294 = vadd.f32 0.0, %v293
    %v295 = vpop.f32.mrb[0].mxu0
    %296 = vmatprep.mubr.bf16.mxu0 0
    %297 = vmatmul.mubr.bf16.gmra.mrb[0].mxu0 %v151
    %v298 = vpop.f32.mrb[0].mxu0
    %v299 = vadd.f32 0.0, %v298
    %v300 = vpop.f32.mrb[0].mxu0
    %v301 = vpop.f32.mrb[0].mxu0
    %v302 = vadd.f32 0.0, %v301
    %v303 = vpop.f32.mrb[0].mxu0
    %304 = vdwg.mxu0
    %v305 = vpack.c.bf16 %v246, %v243
    %v306 = vpack.c.bf16 %v254, %v251
    %v307 = vpack.c.bf16 %v262, %v259
    %v308 = vpack.c.bf16 %v270, %v267
    %v309 = vpack.c.bf16 %v278, %v275
    %v310 = vpack.c.bf16 %v286, %v283
    %v311 = vpack.c.bf16 %v294, %v291
    %v312 = vpack.c.bf16 %v302, %v299
    %v313 = vld [vmem:[#allocation7] sm:$0xff]
    %v314 = vld [vmem:[#allocation7 + $0x8] sm:$0xff]
    %v315 = vld [vmem:[#allocation7 + $0x10] sm:$0xff]
    %v316 = vld [vmem:[#allocation7 + $0x18] sm:$0xff]
    %v317 = vld [vmem:[#allocation7 + $0x20] sm:$0xff]
    %v318 = vld [vmem:[#allocation7 + $0x28] sm:$0xff]
    %v319 = vld [vmem:[#allocation7 + $0x30] sm:$0xff]
    %v320 = vld [vmem:[#allocation7 + $0x38] sm:$0xff]
    %v321 = vld [vmem:[#allocation7 + $0x40] sm:$0xff]
    %v322 = vld [vmem:[#allocation7 + $0x48] sm:$0xff]
    %v323 = vld [vmem:[#allocation7 + $0x50] sm:$0xff]
    %v324 = vld [vmem:[#allocation7 + $0x58] sm:$0xff]
    %v325 = vld [vmem:[#allocation7 + $0x60] sm:$0xff]
    %v326 = vld [vmem:[#allocation7 + $0x68] sm:$0xff]
    %v327 = vld [vmem:[#allocation7 + $0x70] sm:$0xff]
    %v328 = vld [vmem:[#allocation7 + $0x78] sm:$0xff]
    %v329 = vld [vmem:[%s3] sm:$0x3]
    %v331 = vlaneseq
    %v332 = vshrl.u32 %v331, 7
    %v333 = vsub.s32 0, %v332
    %v334 = vrot.slane %v329, %v333
    %v335 = vlaneseq
    %v336 = vshrl.u32 %v335, 7
    %v337 = vsub.s32 1, %v336
    %v338 = vrot.slane %v329, %v337
    %v357 = vunpack.c.l.b16 %v313
    %v358 = vunpack.c.h.b16 %v313
    %v359 = vunpack.c.l.b16 %v314
    %v360 = vunpack.c.h.b16 %v314
    %v361 = vunpack.c.l.b16 %v315
    %v362 = vunpack.c.h.b16 %v315
    %v363 = vunpack.c.l.b16 %v316
    %v364 = vunpack.c.h.b16 %v316
    %v365 = vunpack.c.l.b16 %v317
    %v366 = vunpack.c.h.b16 %v317
    %v367 = vunpack.c.l.b16 %v318
    %v368 = vunpack.c.h.b16 %v318
    %v369 = vunpack.c.l.b16 %v319
    %v370 = vunpack.c.h.b16 %v319
    %v371 = vunpack.c.l.b16 %v320
    %v372 = vunpack.c.h.b16 %v320
    %v373 = vunpack.c.l.b16 %v321
    %v374 = vunpack.c.h.b16 %v321
    %v375 = vunpack.c.l.b16 %v322
    %v376 = vunpack.c.h.b16 %v322
    %v377 = vunpack.c.l.b16 %v323
    %v378 = vunpack.c.h.b16 %v323
    %v379 = vunpack.c.l.b16 %v324
    %v380 = vunpack.c.h.b16 %v324
    %v381 = vunpack.c.l.b16 %v325
    %v382 = vunpack.c.h.b16 %v325
    %v383 = vunpack.c.l.b16 %v326
    %v384 = vunpack.c.h.b16 %v326
    %v385 = vunpack.c.l.b16 %v327
    %v386 = vunpack.c.h.b16 %v327
    %v387 = vunpack.c.l.b16 %v328
    %v388 = vunpack.c.h.b16 %v328
    %v389 = vpack.c.b16 %v359, %v357
    %v390 = vpack.c.b16 %v360, %v358
    %v391 = vpack.c.b16 %v363, %v361
    %v392 = vpack.c.b16 %v364, %v362
    %v393 = vpack.c.b16 %v367, %v365
    %v394 = vpack.c.b16 %v368, %v366
    %v395 = vpack.c.b16 %v371, %v369
    %v396 = vpack.c.b16 %v372, %v370
    %v397 = vpack.c.b16 %v375, %v373
    %v398 = vpack.c.b16 %v376, %v374
    %v399 = vpack.c.b16 %v379, %v377
    %v400 = vpack.c.b16 %v380, %v378
    %v401 = vpack.c.b16 %v383, %v381
    %v402 = vpack.c.b16 %v384, %v382
    %v403 = vpack.c.b16 %v387, %v385
    %v404 = vpack.c.b16 %v388, %v386
    %421 = vmatprep.subr.bf16.mxu0 %v390
    %422 = vmatpush1.bf16.msra.mxu0 %v389
    %423 = vmatprep.subr.bf16.mxu0 %v392
    %424 = vmatpush1.bf16.msra.mxu0 %v391
    %425 = vmatprep.subr.bf16.mxu0 %v394
    %426 = vmatpush1.bf16.msra.mxu0 %v393
    %427 = vmatprep.subr.bf16.mxu0 %v396
    %428 = vmatpush1.bf16.msra.mxu0 %v395
    %429 = vmatprep.subr.bf16.mxu0 %v398
    %430 = vmatpush1.bf16.msra.mxu0 %v397
    %431 = vmatprep.subr.bf16.mxu0 %v400
    %432 = vmatpush1.bf16.msra.mxu0 %v399
    %433 = vmatprep.subr.bf16.mxu0 %v402
    %434 = vmatpush1.bf16.msra.mxu0 %v401
    %435 = vmatprep.subr.bf16.mxu0 %v404
    %436 = vmatpush1.bf16.msra.mxu0 %v403
    %437 = vmatprep.subr.bf16.mxu0 0
    %438 = vmatpush1.bf16.msra.mxu0 0
    %439 = vmatprep.subr.bf16.mxu0 0
    %440 = vmatpush1.bf16.msra.mxu0 0
    %441 = vmatprep.subr.bf16.mxu0 0
    %442 = vmatpush1.bf16.msra.mxu0 0
    %443 = vmatprep.subr.bf16.mxu0 0
    %444 = vmatpush1.bf16.msra.mxu0 0
    %445 = vmatprep.subr.bf16.mxu0 0
    %446 = vmatpush1.bf16.msra.mxu0 0
    %447 = vmatprep.subr.bf16.mxu0 0
    %448 = vmatpush1.bf16.msra.mxu0 0
    %449 = vmatprep.subr.bf16.mxu0 0
    %450 = vmatpush1.bf16.msra.mxu0 0
    %451 = vmatprep.subr.bf16.mxu0 0
    %452 = vmatpush1.bf16.msra.mxu0 0
    %453 = vmatprep.mubr.bf16.mxu0 0
    %454 = vmatmul.mubr.bf16.gmra.mrb[0].mxu0 %v305
    %v455 = vpop.f32.mrb[0].mxu0
    %v456 = vadd.f32 %v334, %v455
    %v457 = vpop.f32.mrb[0].mxu0
    %v458 = vadd.f32 %v338, %v457
    %v459 = vpop.f32.mrb[0].mxu0
    %v460 = vadd.f32 %v334, %v459
    %v461 = vpop.f32.mrb[0].mxu0
    %v462 = vadd.f32 %v338, %v461
    %463 = vmatprep.mubr.bf16.mxu0 0
    %464 = vmatmul.mubr.bf16.gmra.mrb[0].mxu0 %v306
    %v465 = vpop.f32.mrb[0].mxu0
    %v466 = vadd.f32 %v334, %v465
    %v467 = vpop.f32.mrb[0].mxu0
    %v468 = vadd.f32 %v338, %v467
    %v469 = vpop.f32.mrb[0].mxu0
    %v470 = vadd.f32 %v334, %v469
    %v471 = vpop.f32.mrb[0].mxu0
    %v472 = vadd.f32 %v338, %v471
    %473 = vmatprep.mubr.bf16.mxu0 0
    %474 = vmatmul.mubr.bf16.gmra.mrb[0].mxu0 %v307
    %v475 = vpop.f32.mrb[0].mxu0
    %v476 = vadd.f32 %v334, %v475
    %v477 = vpop.f32.mrb[0].mxu0
    %v478 = vadd.f32 %v338, %v477
    %v479 = vpop.f32.mrb[0].mxu0
    %v480 = vadd.f32 %v334, %v479
    %v481 = vpop.f32.mrb[0].mxu0
    %v482 = vadd.f32 %v338, %v481
    %483 = vmatprep.mubr.bf16.mxu0 0
    %484 = vmatmul.mubr.bf16.gmra.mrb[0].mxu0 %v308
    %v485 = vpop.f32.mrb[0].mxu0
    %v486 = vadd.f32 %v334, %v485
    %v487 = vpop.f32.mrb[0].mxu0
    %v488 = vadd.f32 %v338, %v487
    %v489 = vpop.f32.mrb[0].mxu0
    %v490 = vadd.f32 %v334, %v489
    %v491 = vpop.f32.mrb[0].mxu0
    %v492 = vadd.f32 %v338, %v491
    %493 = vmatprep.mubr.bf16.mxu0 0
    %494 = vmatmul.mubr.bf16.gmra.mrb[0].mxu0 %v309
    %v495 = vpop.f32.mrb[0].mxu0
    %v496 = vadd.f32 %v334, %v495
    %v497 = vpop.f32.mrb[0].mxu0
    %v498 = vadd.f32 %v338, %v497
    %v499 = vpop.f32.mrb[0].mxu0
    %v500 = vadd.f32 %v334, %v499
    %v501 = vpop.f32.mrb[0].mxu0
    %v502 = vadd.f32 %v338, %v501
    %503 = vmatprep.mubr.bf16.mxu0 0
    %504 = vmatmul.mubr.bf16.gmra.mrb[0].mxu0 %v310
    %v505 = vpop.f32.mrb[0].mxu0
    %v506 = vadd.f32 %v334, %v505
    %v507 = vpop.f32.mrb[0].mxu0
    %v508 = vadd.f32 %v338, %v507
    %v509 = vpop.f32.mrb[0].mxu0
    %v510 = vadd.f32 %v334, %v509
    %v511 = vpop.f32.mrb[0].mxu0
    %v512 = vadd.f32 %v338, %v511
    %513 = vmatprep.mubr.bf16.mxu0 0
    %514 = vmatmul.mubr.bf16.gmra.mrb[0].mxu0 %v311
    %v515 = vpop.f32.mrb[0].mxu0
    %v516 = vadd.f32 %v334, %v515
    %v517 = vpop.f32.mrb[0].mxu0
    %v518 = vadd.f32 %v338, %v517
    %v519 = vpop.f32.mrb[0].mxu0
    %v520 = vadd.f32 %v334, %v519
    %v521 = vpop.f32.mrb[0].mxu0
    %v522 = vadd.f32 %v338, %v521
    %523 = vmatprep.mubr.bf16.mxu0 0
    %524 = vmatmul.mubr.bf16.gmra.mrb[0].mxu0 %v312
    %v525 = vpop.f32.mrb[0].mxu0
    %v526 = vadd.f32 %v334, %v525
    %v527 = vpop.f32.mrb[0].mxu0
    %v528 = vadd.f32 %v338, %v527
    %v529 = vpop.f32.mrb[0].mxu0
    %v530 = vadd.f32 %v334, %v529
    %v531 = vpop.f32.mrb[0].mxu0
    %v532 = vadd.f32 %v338, %v531
    %533 = vdwg.mxu0
    %v534 = vmax.f32 %v456, 0.0
    %v535 = vmax.f32 %v458, 0.0
    %v536 = vmax.f32 %v460, 0.0
    %v537 = vmax.f32 %v462, 0.0
    %v538 = vmax.f32 %v466, 0.0
    %v539 = vmax.f32 %v468, 0.0
    %v540 = vmax.f32 %v470, 0.0
    %v541 = vmax.f32 %v472, 0.0
    %v542 = vmax.f32 %v476, 0.0
    %v543 = vmax.f32 %v478, 0.0
    %v544 = vmax.f32 %v480, 0.0
    %v545 = vmax.f32 %v482, 0.0
    %v546 = vmax.f32 %v486, 0.0
    %v547 = vmax.f32 %v488, 0.0
    %v548 = vmax.f32 %v490, 0.0
    %v549 = vmax.f32 %v492, 0.0
    %v550 = vmax.f32 %v496, 0.0
    %v551 = vmax.f32 %v498, 0.0
    %v552 = vmax.f32 %v500, 0.0
    %v553 = vmax.f32 %v502, 0.0
    %v554 = vmax.f32 %v506, 0.0
    %v555 = vmax.f32 %v508, 0.0
    %v556 = vmax.f32 %v510, 0.0
    %v557 = vmax.f32 %v512, 0.0
    %v558 = vmax.f32 %v516, 0.0
    %v559 = vmax.f32 %v518, 0.0
    %v560 = vmax.f32 %v520, 0.0
    %v561 = vmax.f32 %v522, 0.0
    %v562 = vmax.f32 %v526, 0.0
    %v563 = vmax.f32 %v528, 0.0
    %v564 = vmax.f32 %v530, 0.0
    %v565 = vmax.f32 %v532, 0.0
    %v566 = vpack.c.bf16 %v536, %v534
    %v567 = vpack.c.bf16 %v537, %v535
    %v568 = vpack.c.bf16 %v540, %v538
    %v569 = vpack.c.bf16 %v541, %v539
    %v570 = vpack.c.bf16 %v544, %v542
    %v571 = vpack.c.bf16 %v545, %v543
    %v572 = vpack.c.bf16 %v548, %v546
    %v573 = vpack.c.bf16 %v549, %v547
    %v574 = vpack.c.bf16 %v552, %v550
    %v575 = vpack.c.bf16 %v553, %v551
    %v576 = vpack.c.bf16 %v556, %v554
    %v577 = vpack.c.bf16 %v557, %v555
    %v578 = vpack.c.bf16 %v560, %v558
    %v579 = vpack.c.bf16 %v561, %v559
    %v580 = vpack.c.bf16 %v564, %v562
    %v581 = vpack.c.bf16 %v565, %v563
    %582 = vmatprep.subr.bf16.mxu0 %v567
    %583 = vmatpush1.bf16.msra.mxu0 %v566
    %584 = vmatprep.subr.bf16.mxu0 %v569
    %585 = vmatpush1.bf16.msra.mxu0 %v568
    %586 = vmatprep.subr.bf16.mxu0 %v571
    %587 = vmatpush1.bf16.msra.mxu0 %v570
    %588 = vmatprep.subr.bf16.mxu0 %v573
    %589 = vmatpush1.bf16.msra.mxu0 %v572
    %590 = vmatprep.subr.bf16.mxu0 %v575
    %591 = vmatpush1.bf16.msra.mxu0 %v574
    %592 = vmatprep.subr.bf16.mxu0 %v577
    %593 = vmatpush1.bf16.msra.mxu0 %v576
    %594 = vmatprep.subr.bf16.mxu0 %v579
    %595 = vmatpush1.bf16.msra.mxu0 %v578
    %596 = vmatprep.subr.bf16.mxu0 %v581
    %597 = vmatpush1.bf16.msra.mxu0 %v580
    %598 = vmatprep.subr.bf16.mxu0 0
    %599 = vmatpush1.bf16.msra.mxu0 0
    %600 = vmatprep.subr.bf16.mxu0 0
    %601 = vmatpush1.bf16.msra.mxu0 0
    %602 = vmatprep.subr.bf16.mxu0 0
    %603 = vmatpush1.bf16.msra.mxu0 0
    %604 = vmatprep.subr.bf16.mxu0 0
    %605 = vmatpush1.bf16.msra.mxu0 0
    %606 = vmatprep.subr.bf16.mxu0 0
    %607 = vmatpush1.bf16.msra.mxu0 0
    %608 = vmatprep.subr.bf16.mxu0 0
    %609 = vmatpush1.bf16.msra.mxu0 0
    %610 = vmatprep.subr.bf16.mxu0 0
    %611 = vmatpush1.bf16.msra.mxu0 0
    %612 = vmatprep.subr.bf16.mxu0 0
    %613 = vmatpush1.bf16.msra.mxu0 0
    %614 = vmatprep.mubr.bf16.mxu0 0
    %615 = vmatmul.mubr.bf16.gmra.mrb[0].mxu0 %v144
    %v616 = vpop.f32.mrb[0].mxu0
    %v617 = vadd.f32 0.0, %v616
    %v618 = vpop.f32.mrb[0].mxu0
    %v619 = vadd.f32 0.0, %v618
    %v620 = vpop.f32.mrb[0].mxu0
    %v621 = vadd.f32 0.0, %v620
    %v622 = vpop.f32.mrb[0].mxu0
    %v623 = vadd.f32 0.0, %v622
    %624 = vmatprep.mubr.bf16.mxu0 0
    %625 = vmatmul.mubr.bf16.gmra.mrb[0].mxu0 %v145
    %v626 = vpop.f32.mrb[0].mxu0
    %v627 = vadd.f32 0.0, %v626
    %v628 = vpop.f32.mrb[0].mxu0
    %v629 = vadd.f32 0.0, %v628
    %v630 = vpop.f32.mrb[0].mxu0
    %v631 = vadd.f32 0.0, %v630
    %v632 = vpop.f32.mrb[0].mxu0
    %v633 = vadd.f32 0.0, %v632
    %634 = vmatprep.mubr.bf16.mxu0 0
    %635 = vmatmul.mubr.bf16.gmra.mrb[0].mxu0 %v146
    %v636 = vpop.f32.mrb[0].mxu0
    %v637 = vadd.f32 0.0, %v636
    %v638 = vpop.f32.mrb[0].mxu0
    %v639 = vadd.f32 0.0, %v638
    %v640 = vpop.f32.mrb[0].mxu0
    %v641 = vadd.f32 0.0, %v640
    %v642 = vpop.f32.mrb[0].mxu0
    %v643 = vadd.f32 0.0, %v642
    %644 = vmatprep.mubr.bf16.mxu0 0
    %645 = vmatmul.mubr.bf16.gmra.mrb[0].mxu0 %v147
    %v646 = vpop.f32.mrb[0].mxu0
    %v647 = vadd.f32 0.0, %v646
    %v648 = vpop.f32.mrb[0].mxu0
    %v649 = vadd.f32 0.0, %v648
    %v650 = vpop.f32.mrb[0].mxu0
    %v651 = vadd.f32 0.0, %v650
    %v652 = vpop.f32.mrb[0].mxu0
    %v653 = vadd.f32 0.0, %v652
    %654 = vmatprep.mubr.bf16.mxu0 0
    %655 = vmatmul.mubr.bf16.gmra.mrb[0].mxu0 %v148
    %v656 = vpop.f32.mrb[0].mxu0
    %v657 = vadd.f32 0.0, %v656
    %v658 = vpop.f32.mrb[0].mxu0
    %v659 = vadd.f32 0.0, %v658
    %v660 = vpop.f32.mrb[0].mxu0
    %v661 = vadd.f32 0.0, %v660
    %v662 = vpop.f32.mrb[0].mxu0
    %v663 = vadd.f32 0.0, %v662
    %664 = vmatprep.mubr.bf16.mxu0 0
    %665 = vmatmul.mubr.bf16.gmra.mrb[0].mxu0 %v149
    %v666 = vpop.f32.mrb[0].mxu0
    %v667 = vadd.f32 0.0, %v666
    %v668 = vpop.f32.mrb[0].mxu0
    %v669 = vadd.f32 0.0, %v668
    %v670 = vpop.f32.mrb[0].mxu0
    %v671 = vadd.f32 0.0, %v670
    %v672 = vpop.f32.mrb[0].mxu0
    %v673 = vadd.f32 0.0, %v672
    %674 = vmatprep.mubr.bf16.mxu0 0
    %675 = vmatmul.mubr.bf16.gmra.mrb[0].mxu0 %v150
    %v676 = vpop.f32.mrb[0].mxu0
    %v677 = vadd.f32 0.0, %v676
    %v678 = vpop.f32.mrb[0].mxu0
    %v679 = vadd.f32 0.0, %v678
    %v680 = vpop.f32.mrb[0].mxu0
    %v681 = vadd.f32 0.0, %v680
    %v682 = vpop.f32.mrb[0].mxu0
    %v683 = vadd.f32 0.0, %v682
    %684 = vmatprep.mubr.bf16.mxu0 0
    %685 = vmatmul.mubr.bf16.gmra.mrb[0].mxu0 %v151
    %v686 = vpop.f32.mrb[0].mxu0
    %v687 = vadd.f32 0.0, %v686
    %v688 = vpop.f32.mrb[0].mxu0
    %v689 = vadd.f32 0.0, %v688
    %v690 = vpop.f32.mrb[0].mxu0
    %v691 = vadd.f32 0.0, %v690
    %v692 = vpop.f32.mrb[0].mxu0
    %v693 = vadd.f32 0.0, %v692
    %694 = vdwg.mxu0
    %v695 = vpack.c.bf16 %v621, %v617
    %v696 = vpack.c.bf16 %v623, %v619
    %v697 = vpack.c.bf16 %v631, %v627
    %v698 = vpack.c.bf16 %v633, %v629
    %v699 = vpack.c.bf16 %v641, %v637
    %v700 = vpack.c.bf16 %v643, %v639
    %v701 = vpack.c.bf16 %v651, %v647
    %v702 = vpack.c.bf16 %v653, %v649
    %v703 = vpack.c.bf16 %v661, %v657
    %v704 = vpack.c.bf16 %v663, %v659
    %v705 = vpack.c.bf16 %v671, %v667
    %v706 = vpack.c.bf16 %v673, %v669
    %v707 = vpack.c.bf16 %v681, %v677
    %v708 = vpack.c.bf16 %v683, %v679
    %v709 = vpack.c.bf16 %v691, %v687
    %v710 = vpack.c.bf16 %v693, %v689
    %v711 = vld [vmem:[#allocation8] sm:$0xff]
    %v712 = vld [vmem:[#allocation8 + $0x8] sm:$0xff]
    %v713 = vld [vmem:[#allocation8 + $0x10] sm:$0xff]
    %v714 = vld [vmem:[#allocation8 + $0x18] sm:$0xff]
    %v715 = vld [vmem:[#allocation8 + $0x20] sm:$0xff]
    %v716 = vld [vmem:[#allocation8 + $0x28] sm:$0xff]
    %v717 = vld [vmem:[#allocation8 + $0x30] sm:$0xff]
    %v718 = vld [vmem:[#allocation8 + $0x38] sm:$0xff]
    %v719 = vld [vmem:[#allocation8 + $0x40] sm:$0xff]
    %v720 = vld [vmem:[#allocation8 + $0x48] sm:$0xff]
    %v721 = vld [vmem:[#allocation8 + $0x50] sm:$0xff]
    %v722 = vld [vmem:[#allocation8 + $0x58] sm:$0xff]
    %v723 = vld [vmem:[#allocation8 + $0x60] sm:$0xff]
    %v724 = vld [vmem:[#allocation8 + $0x68] sm:$0xff]
    %v725 = vld [vmem:[#allocation8 + $0x70] sm:$0xff]
    %v726 = vld [vmem:[#allocation8 + $0x78] sm:$0xff]
    %v727 = vld [vmem:[#allocation8 + $0x80] sm:$0xff]
    %v728 = vld [vmem:[#allocation8 + $0x88] sm:$0xff]
    %v729 = vld [vmem:[#allocation8 + $0x90] sm:$0xff]
    %v730 = vld [vmem:[#allocation8 + $0x98] sm:$0xff]
    %v731 = vld [vmem:[#allocation8 + $0xa0] sm:$0xff]
    %v732 = vld [vmem:[#allocation8 + $0xa8] sm:$0xff]
    %v733 = vld [vmem:[#allocation8 + $0xb0] sm:$0xff]
    %v734 = vld [vmem:[#allocation8 + $0xb8] sm:$0xff]
    %v735 = vld [vmem:[#allocation8 + $0xc0] sm:$0xff]
    %v736 = vld [vmem:[#allocation8 + $0xc8] sm:$0xff]
    %v737 = vld [vmem:[#allocation8 + $0xd0] sm:$0xff]
    %v738 = vld [vmem:[#allocation8 + $0xd8] sm:$0xff]
    %v739 = vld [vmem:[#allocation8 + $0xe0] sm:$0xff]
    %v740 = vld [vmem:[#allocation8 + $0xe8] sm:$0xff]
    %v741 = vld [vmem:[#allocation8 + $0xf0] sm:$0xff]
    %v742 = vld [vmem:[#allocation8 + $0xf8] sm:$0xff]
    %v743 = vld [vmem:[%s5] sm:$0x3]
    %v745 = vlaneseq
    %v746 = vshrl.u32 %v745, 7
    %v747 = vsub.s32 0, %v746
    %v748 = vrot.slane %v743, %v747
    %v749 = vlaneseq
    %v750 = vshrl.u32 %v749, 7
    %v751 = vsub.s32 1, %v750
    %v752 = vrot.slane %v743, %v751
    %v787 = vunpack.c.l.b16 %v711
    %v788 = vunpack.c.h.b16 %v711
    %v789 = vunpack.c.l.b16 %v712
    %v790 = vunpack.c.h.b16 %v712
    %v791 = vunpack.c.l.b16 %v713
    %v792 = vunpack.c.h.b16 %v713
    %v793 = vunpack.c.l.b16 %v714
    %v794 = vunpack.c.h.b16 %v714
    %v795 = vunpack.c.l.b16 %v715
    %v796 = vunpack.c.h.b16 %v715
    %v797 = vunpack.c.l.b16 %v716
    %v798 = vunpack.c.h.b16 %v716
    %v799 = vunpack.c.l.b16 %v717
    %v800 = vunpack.c.h.b16 %v717
    %v801 = vunpack.c.l.b16 %v718
    %v802 = vunpack.c.h.b16 %v718
    %v803 = vunpack.c.l.b16 %v719
    %v804 = vunpack.c.h.b16 %v719
    %v805 = vunpack.c.l.b16 %v720
    %v806 = vunpack.c.h.b16 %v720
    %v807 = vunpack.c.l.b16 %v721
    %v808 = vunpack.c.h.b16 %v721
    %v809 = vunpack.c.l.b16 %v722
    %v810 = vunpack.c.h.b16 %v722
    %v811 = vunpack.c.l.b16 %v723
    %v812 = vunpack.c.h.b16 %v723
    %v813 = vunpack.c.l.b16 %v724
    %v814 = vunpack.c.h.b16 %v724
    %v815 = vunpack.c.l.b16 %v725
    %v816 = vunpack.c.h.b16 %v725
    %v817 = vunpack.c.l.b16 %v726
    %v818 = vunpack.c.h.b16 %v726
    %v819 = vunpack.c.l.b16 %v727
    %v820 = vunpack.c.h.b16 %v727
    %v821 = vunpack.c.l.b16 %v728
    %v822 = vunpack.c.h.b16 %v728
    %v823 = vunpack.c.l.b16 %v729
    %v824 = vunpack.c.h.b16 %v729
    %v825 = vunpack.c.l.b16 %v730
    %v826 = vunpack.c.h.b16 %v730
    %v827 = vunpack.c.l.b16 %v731
    %v828 = vunpack.c.h.b16 %v731
    %v829 = vunpack.c.l.b16 %v732
    %v830 = vunpack.c.h.b16 %v732
    %v831 = vunpack.c.l.b16 %v733
    %v832 = vunpack.c.h.b16 %v733
    %v833 = vunpack.c.l.b16 %v734
    %v834 = vunpack.c.h.b16 %v734
    %v835 = vunpack.c.l.b16 %v735
    %v836 = vunpack.c.h.b16 %v735
    %v837 = vunpack.c.l.b16 %v736
    %v838 = vunpack.c.h.b16 %v736
    %v839 = vunpack.c.l.b16 %v737
    %v840 = vunpack.c.h.b16 %v737
    %v841 = vunpack.c.l.b16 %v738
    %v842 = vunpack.c.h.b16 %v738
    %v843 = vunpack.c.l.b16 %v739
    %v844 = vunpack.c.h.b16 %v739
    %v845 = vunpack.c.l.b16 %v740
    %v846 = vunpack.c.h.b16 %v740
    %v847 = vunpack.c.l.b16 %v741
    %v848 = vunpack.c.h.b16 %v741
    %v849 = vunpack.c.l.b16 %v742
    %v850 = vunpack.c.h.b16 %v742
    %v851 = vpack.c.b16 %v789, %v787
    %v852 = vpack.c.b16 %v790, %v788
    %v853 = vpack.c.b16 %v793, %v791
    %v854 = vpack.c.b16 %v794, %v792
    %v855 = vpack.c.b16 %v797, %v795
    %v856 = vpack.c.b16 %v798, %v796
    %v857 = vpack.c.b16 %v801, %v799
    %v858 = vpack.c.b16 %v802, %v800
    %v859 = vpack.c.b16 %v805, %v803
    %v860 = vpack.c.b16 %v806, %v804
    %v861 = vpack.c.b16 %v809, %v807
    %v862 = vpack.c.b16 %v810, %v808
    %v863 = vpack.c.b16 %v813, %v811
    %v864 = vpack.c.b16 %v814, %v812
    %v865 = vpack.c.b16 %v817, %v815
    %v866 = vpack.c.b16 %v818, %v816
    %v867 = vpack.c.b16 %v821, %v819
    %v868 = vpack.c.b16 %v822, %v820
    %v869 = vpack.c.b16 %v825, %v823
    %v870 = vpack.c.b16 %v826, %v824
    %v871 = vpack.c.b16 %v829, %v827
    %v872 = vpack.c.b16 %v830, %v828
    %v873 = vpack.c.b16 %v833, %v831
    %v874 = vpack.c.b16 %v834, %v832
    %v875 = vpack.c.b16 %v837, %v835
    %v876 = vpack.c.b16 %v838, %v836
    %v877 = vpack.c.b16 %v841, %v839
    %v878 = vpack.c.b16 %v842, %v840
    %v879 = vpack.c.b16 %v845, %v843
    %v880 = vpack.c.b16 %v846, %v844
    %v881 = vpack.c.b16 %v849, %v847
    %v882 = vpack.c.b16 %v850, %v848
    %915 = vmatprep.subr.bf16.mxu0 %v852
    %916 = vmatpush1.bf16.msra.mxu0 %v851
    %917 = vmatprep.subr.bf16.mxu0 %v854
    %918 = vmatpush1.bf16.msra.mxu0 %v853
    %919 = vmatprep.subr.bf16.mxu0 %v856
    %920 = vmatpush1.bf16.msra.mxu0 %v855
    %921 = vmatprep.subr.bf16.mxu0 %v858
    %922 = vmatpush1.bf16.msra.mxu0 %v857
    %923 = vmatprep.subr.bf16.mxu0 %v860
    %924 = vmatpush1.bf16.msra.mxu0 %v859
    %925 = vmatprep.subr.bf16.mxu0 %v862
    %926 = vmatpush1.bf16.msra.mxu0 %v861
    %927 = vmatprep.subr.bf16.mxu0 %v864
    %928 = vmatpush1.bf16.msra.mxu0 %v863
    %929 = vmatprep.subr.bf16.mxu0 %v866
    %930 = vmatpush1.bf16.msra.mxu0 %v865
    %931 = vmatprep.subr.bf16.mxu0 %v868
    %932 = vmatpush1.bf16.msra.mxu0 %v867
    %933 = vmatprep.subr.bf16.mxu0 %v870
    %934 = vmatpush1.bf16.msra.mxu0 %v869
    %935 = vmatprep.subr.bf16.mxu0 %v872
    %936 = vmatpush1.bf16.msra.mxu0 %v871
    %937 = vmatprep.subr.bf16.mxu0 %v874
    %938 = vmatpush1.bf16.msra.mxu0 %v873
    %939 = vmatprep.subr.bf16.mxu0 %v876
    %940 = vmatpush1.bf16.msra.mxu0 %v875
    %941 = vmatprep.subr.bf16.mxu0 %v878
    %942 = vmatpush1.bf16.msra.mxu0 %v877
    %943 = vmatprep.subr.bf16.mxu0 %v880
    %944 = vmatpush1.bf16.msra.mxu0 %v879
    %945 = vmatprep.subr.bf16.mxu0 %v882
    %946 = vmatpush1.bf16.msra.mxu0 %v881
    %947 = vmatprep.mubr.bf16.mxu0 %v696
    %948 = vmatmul.mubr.bf16.gmra.mrb[0].mxu0 %v695
    %v949 = vpop.f32.mrb[0].mxu0
    %v950 = vadd.f32 %v748, %v949
    %v951 = vpop.f32.mrb[0].mxu0
    %v952 = vadd.f32 %v752, %v951
    %v953 = vpop.f32.mrb[0].mxu0
    %v954 = vadd.f32 %v748, %v953
    %v955 = vpop.f32.mrb[0].mxu0
    %v956 = vadd.f32 %v752, %v955
    %957 = vmatprep.mubr.bf16.mxu0 %v698
    %958 = vmatmul.mubr.bf16.gmra.mrb[0].mxu0 %v697
    %v959 = vpop.f32.mrb[0].mxu0
    %v960 = vadd.f32 %v748, %v959
    %v961 = vpop.f32.mrb[0].mxu0
    %v962 = vadd.f32 %v752, %v961
    %v963 = vpop.f32.mrb[0].mxu0
    %v964 = vadd.f32 %v748, %v963
    %v965 = vpop.f32.mrb[0].mxu0
    %v966 = vadd.f32 %v752, %v965
    %967 = vmatprep.mubr.bf16.mxu0 %v700
    %968 = vmatmul.mubr.bf16.gmra.mrb[0].mxu0 %v699
    %v969 = vpop.f32.mrb[0].mxu0
    %v970 = vadd.f32 %v748, %v969
    %v971 = vpop.f32.mrb[0].mxu0
    %v972 = vadd.f32 %v752, %v971
    %v973 = vpop.f32.mrb[0].mxu0
    %v974 = vadd.f32 %v748, %v973
    %v975 = vpop.f32.mrb[0].mxu0
    %v976 = vadd.f32 %v752, %v975
    %977 = vmatprep.mubr.bf16.mxu0 %v702
    %978 = vmatmul.mubr.bf16.gmra.mrb[0].mxu0 %v701
    %v979 = vpop.f32.mrb[0].mxu0
    %v980 = vadd.f32 %v748, %v979
    %v981 = vpop.f32.mrb[0].mxu0
    %v982 = vadd.f32 %v752, %v981
    %v983 = vpop.f32.mrb[0].mxu0
    %v984 = vadd.f32 %v748, %v983
    %v985 = vpop.f32.mrb[0].mxu0
    %v986 = vadd.f32 %v752, %v985
    %987 = vmatprep.mubr.bf16.mxu0 %v704
    %988 = vmatmul.mubr.bf16.gmra.mrb[0].mxu0 %v703
    %v989 = vpop.f32.mrb[0].mxu0
    %v990 = vadd.f32 %v748, %v989
    %v991 = vpop.f32.mrb[0].mxu0
    %v992 = vadd.f32 %v752, %v991
    %v993 = vpop.f32.mrb[0].mxu0
    %v994 = vadd.f32 %v748, %v993
    %v995 = vpop.f32.mrb[0].mxu0
    %v996 = vadd.f32 %v752, %v995
    %997 = vmatprep.mubr.bf16.mxu0 %v706
    %998 = vmatmul.mubr.bf16.gmra.mrb[0].mxu0 %v705
    %v999 = vpop.f32.mrb[0].mxu0
    %v1000 = vadd.f32 %v748, %v999
    %v1001 = vpop.f32.mrb[0].mxu0
    %v1002 = vadd.f32 %v752, %v1001
    %v1003 = vpop.f32.mrb[0].mxu0
    %v1004 = vadd.f32 %v748, %v1003
    %v1005 = vpop.f32.mrb[0].mxu0
    %v1006 = vadd.f32 %v752, %v1005
    %1007 = vmatprep.mubr.bf16.mxu0 %v708
    %1008 = vmatmul.mubr.bf16.gmra.mrb[0].mxu0 %v707
    %v1009 = vpop.f32.mrb[0].mxu0
    %v1010 = vadd.f32 %v748, %v1009
    %v1011 = vpop.f32.mrb[0].mxu0
    %v1012 = vadd.f32 %v752, %v1011
    %v1013 = vpop.f32.mrb[0].mxu0
    %v1014 = vadd.f32 %v748, %v1013
    %v1015 = vpop.f32.mrb[0].mxu0
    %v1016 = vadd.f32 %v752, %v1015
    %1017 = vmatprep.mubr.bf16.mxu0 %v710
    %1018 = vmatmul.mubr.bf16.gmra.mrb[0].mxu0 %v709
    %v1019 = vpop.f32.mrb[0].mxu0
    %v1020 = vadd.f32 %v748, %v1019
    %v1021 = vpop.f32.mrb[0].mxu0
    %v1022 = vadd.f32 %v752, %v1021
    %v1023 = vpop.f32.mrb[0].mxu0
    %v1024 = vadd.f32 %v748, %v1023
    %v1025 = vpop.f32.mrb[0].mxu0
    %v1026 = vadd.f32 %v752, %v1025
    %1027 = vdwg.mxu0
    %v1028 = vmax.f32 %v950, 0.0
    %v1029 = vmax.f32 %v952, 0.0
    %v1030 = vmax.f32 %v954, 0.0
    %v1031 = vmax.f32 %v956, 0.0
    %v1032 = vmax.f32 %v960, 0.0
    %v1033 = vmax.f32 %v962, 0.0
    %v1034 = vmax.f32 %v964, 0.0
    %v1035 = vmax.f32 %v966, 0.0
    %v1036 = vmax.f32 %v970, 0.0
    %v1037 = vmax.f32 %v972, 0.0
    %v1038 = vmax.f32 %v974, 0.0
    %v1039 = vmax.f32 %v976, 0.0
    %v1040 = vmax.f32 %v980, 0.0
    %v1041 = vmax.f32 %v982, 0.0
    %v1042 = vmax.f32 %v984, 0.0
    %v1043 = vmax.f32 %v986, 0.0
    %v1044 = vmax.f32 %v990, 0.0
    %v1045 = vmax.f32 %v992, 0.0
    %v1046 = vmax.f32 %v994, 0.0
    %v1047 = vmax.f32 %v996, 0.0
    %v1048 = vmax.f32 %v1000, 0.0
    %v1049 = vmax.f32 %v1002, 0.0
    %v1050 = vmax.f32 %v1004, 0.0
    %v1051 = vmax.f32 %v1006, 0.0
    %v1052 = vmax.f32 %v1010, 0.0
    %v1053 = vmax.f32 %v1012, 0.0
    %v1054 = vmax.f32 %v1014, 0.0
    %v1055 = vmax.f32 %v1016, 0.0
    %v1056 = vmax.f32 %v1020, 0.0
    %v1057 = vmax.f32 %v1022, 0.0
    %v1058 = vmax.f32 %v1024, 0.0
    %v1059 = vmax.f32 %v1026, 0.0
    %v1060 = vpack.c.bf16 %v1030, %v1028
    %v1061 = vpack.c.bf16 %v1031, %v1029
    %v1062 = vpack.c.bf16 %v1034, %v1032
    %v1063 = vpack.c.bf16 %v1035, %v1033
    %v1064 = vpack.c.bf16 %v1038, %v1036
    %v1065 = vpack.c.bf16 %v1039, %v1037
    %v1066 = vpack.c.bf16 %v1042, %v1040
    %v1067 = vpack.c.bf16 %v1043, %v1041
    %v1068 = vpack.c.bf16 %v1046, %v1044
    %v1069 = vpack.c.bf16 %v1047, %v1045
    %v1070 = vpack.c.bf16 %v1050, %v1048
    %v1071 = vpack.c.bf16 %v1051, %v1049
    %v1072 = vpack.c.bf16 %v1054, %v1052
    %v1073 = vpack.c.bf16 %v1055, %v1053
    %v1074 = vpack.c.bf16 %v1058, %v1056
    %v1075 = vpack.c.bf16 %v1059, %v1057
    %1076 = vmatprep.subr.bf16.mxu0 %v1061
    %1077 = vmatpush1.bf16.msra.mxu0 %v1060
    %1078 = vmatprep.subr.bf16.mxu0 %v1063
    %1079 = vmatpush1.bf16.msra.mxu0 %v1062
    %1080 = vmatprep.subr.bf16.mxu0 %v1065
    %1081 = vmatpush1.bf16.msra.mxu0 %v1064
    %1082 = vmatprep.subr.bf16.mxu0 %v1067
    %1083 = vmatpush1.bf16.msra.mxu0 %v1066
    %1084 = vmatprep.subr.bf16.mxu0 %v1069
    %1085 = vmatpush1.bf16.msra.mxu0 %v1068
    %1086 = vmatprep.subr.bf16.mxu0 %v1071
    %1087 = vmatpush1.bf16.msra.mxu0 %v1070
    %1088 = vmatprep.subr.bf16.mxu0 %v1073
    %1089 = vmatpush1.bf16.msra.mxu0 %v1072
    %1090 = vmatprep.subr.bf16.mxu0 %v1075
    %1091 = vmatpush1.bf16.msra.mxu0 %v1074
    %1092 = vmatprep.subr.bf16.mxu0 0
    %1093 = vmatpush1.bf16.msra.mxu0 0
    %1094 = vmatprep.subr.bf16.mxu0 0
    %1095 = vmatpush1.bf16.msra.mxu0 0
    %1096 = vmatprep.subr.bf16.mxu0 0
    %1097 = vmatpush1.bf16.msra.mxu0 0
    %1098 = vmatprep.subr.bf16.mxu0 0
    %1099 = vmatpush1.bf16.msra.mxu0 0
    %1100 = vmatprep.subr.bf16.mxu0 0
    %1101 = vmatpush1.bf16.msra.mxu0 0
    %1102 = vmatprep.subr.bf16.mxu0 0
    %1103 = vmatpush1.bf16.msra.mxu0 0
    %1104 = vmatprep.subr.bf16.mxu0 0
    %1105 = vmatpush1.bf16.msra.mxu0 0
    %1106 = vmatprep.subr.bf16.mxu0 0
    %1107 = vmatpush1.bf16.msra.mxu0 0
    %1108 = vmatprep.mubr.bf16.mxu0 0
    %1109 = vmatmul.mubr.bf16.gmra.mrb[0].mxu0 %v144
    %v1110 = vpop.f32.mrb[0].mxu0
    %v1111 = vadd.f32 0.0, %v1110
    %v1112 = vpop.f32.mrb[0].mxu0
    %v1113 = vadd.f32 0.0, %v1112
    %v1114 = vpop.f32.mrb[0].mxu0
    %v1115 = vadd.f32 0.0, %v1114
    %v1116 = vpop.f32.mrb[0].mxu0
    %v1117 = vadd.f32 0.0, %v1116
    %1118 = vmatprep.mubr.bf16.mxu0 0
    %1119 = vmatmul.mubr.bf16.gmra.mrb[0].mxu0 %v145
    %v1120 = vpop.f32.mrb[0].mxu0
    %v1121 = vadd.f32 0.0, %v1120
    %v1122 = vpop.f32.mrb[0].mxu0
    %v1123 = vadd.f32 0.0, %v1122
    %v1124 = vpop.f32.mrb[0].mxu0
    %v1125 = vadd.f32 0.0, %v1124
    %v1126 = vpop.f32.mrb[0].mxu0
    %v1127 = vadd.f32 0.0, %v1126
    %1128 = vmatprep.mubr.bf16.mxu0 0
    %1129 = vmatmul.mubr.bf16.gmra.mrb[0].mxu0 %v146
    %v1130 = vpop.f32.mrb[0].mxu0
    %v1131 = vadd.f32 0.0, %v1130
    %v1132 = vpop.f32.mrb[0].mxu0
    %v1133 = vadd.f32 0.0, %v1132
    %v1134 = vpop.f32.mrb[0].mxu0
    %v1135 = vadd.f32 0.0, %v1134
    %v1136 = vpop.f32.mrb[0].mxu0
    %v1137 = vadd.f32 0.0, %v1136
    %1138 = vmatprep.mubr.bf16.mxu0 0
    %1139 = vmatmul.mubr.bf16.gmra.mrb[0].mxu0 %v147
    %v1140 = vpop.f32.mrb[0].mxu0
    %v1141 = vadd.f32 0.0, %v1140
    %v1142 = vpop.f32.mrb[0].mxu0
    %v1143 = vadd.f32 0.0, %v1142
    %v1144 = vpop.f32.mrb[0].mxu0
    %v1145 = vadd.f32 0.0, %v1144
    %v1146 = vpop.f32.mrb[0].mxu0
    %v1147 = vadd.f32 0.0, %v1146
    %1148 = vmatprep.mubr.bf16.mxu0 0
    %1149 = vmatmul.mubr.bf16.gmra.mrb[0].mxu0 %v148
    %v1150 = vpop.f32.mrb[0].mxu0
    %v1151 = vadd.f32 0.0, %v1150
    %v1152 = vpop.f32.mrb[0].mxu0
    %v1153 = vadd.f32 0.0, %v1152
    %v1154 = vpop.f32.mrb[0].mxu0
    %v1155 = vadd.f32 0.0, %v1154
    %v1156 = vpop.f32.mrb[0].mxu0
    %v1157 = vadd.f32 0.0, %v1156
    %1158 = vmatprep.mubr.bf16.mxu0 0
    %1159 = vmatmul.mubr.bf16.gmra.mrb[0].mxu0 %v149
    %v1160 = vpop.f32.mrb[0].mxu0
    %v1161 = vadd.f32 0.0, %v1160
    %v1162 = vpop.f32.mrb[0].mxu0
    %v1163 = vadd.f32 0.0, %v1162
    %v1164 = vpop.f32.mrb[0].mxu0
    %v1165 = vadd.f32 0.0, %v1164
    %v1166 = vpop.f32.mrb[0].mxu0
    %v1167 = vadd.f32 0.0, %v1166
    %1168 = vmatprep.mubr.bf16.mxu0 0
    %1169 = vmatmul.mubr.bf16.gmra.mrb[0].mxu0 %v150
    %v1170 = vpop.f32.mrb[0].mxu0
    %v1171 = vadd.f32 0.0, %v1170
    %v1172 = vpop.f32.mrb[0].mxu0
    %v1173 = vadd.f32 0.0, %v1172
    %v1174 = vpop.f32.mrb[0].mxu0
    %v1175 = vadd.f32 0.0, %v1174
    %v1176 = vpop.f32.mrb[0].mxu0
    %v1177 = vadd.f32 0.0, %v1176
    %1178 = vmatprep.mubr.bf16.mxu0 0
    %1179 = vmatmul.mubr.bf16.gmra.mrb[0].mxu0 %v151
    %v1180 = vpop.f32.mrb[0].mxu0
    %v1181 = vadd.f32 0.0, %v1180
    %v1182 = vpop.f32.mrb[0].mxu0
    %v1183 = vadd.f32 0.0, %v1182
    %v1184 = vpop.f32.mrb[0].mxu0
    %v1185 = vadd.f32 0.0, %v1184
    %v1186 = vpop.f32.mrb[0].mxu0
    %v1187 = vadd.f32 0.0, %v1186
    %1188 = vdwg.mxu0
    %v1189 = vpack.c.bf16 %v1115, %v1111
    %v1190 = vpack.c.bf16 %v1117, %v1113
    %v1191 = vpack.c.bf16 %v1125, %v1121
    %v1192 = vpack.c.bf16 %v1127, %v1123
    %v1193 = vpack.c.bf16 %v1135, %v1131
    %v1194 = vpack.c.bf16 %v1137, %v1133
    %v1195 = vpack.c.bf16 %v1145, %v1141
    %v1196 = vpack.c.bf16 %v1147, %v1143
    %v1197 = vpack.c.bf16 %v1155, %v1151
    %v1198 = vpack.c.bf16 %v1157, %v1153
    %v1199 = vpack.c.bf16 %v1165, %v1161
    %v1200 = vpack.c.bf16 %v1167, %v1163
    %v1201 = vpack.c.bf16 %v1175, %v1171
    %v1202 = vpack.c.bf16 %v1177, %v1173
    %v1203 = vpack.c.bf16 %v1185, %v1181
    %v1204 = vpack.c.bf16 %v1187, %v1183
    %s1205 = scalar_lea.vmem [#allocation8], 256
    %v1206 = vld [vmem:[%s1205] sm:$0xff]
    %v1207 = vld [vmem:[%s1205 + $0x8] sm:$0xff]
    %v1208 = vld [vmem:[%s1205 + $0x10] sm:$0xff]
    %v1209 = vld [vmem:[%s1205 + $0x18] sm:$0xff]
    %v1210 = vld [vmem:[%s1205 + $0x20] sm:$0xff]
    %v1211 = vld [vmem:[%s1205 + $0x28] sm:$0xff]
    %v1212 = vld [vmem:[%s1205 + $0x30] sm:$0xff]
    %v1213 = vld [vmem:[%s1205 + $0x38] sm:$0xff]
    %v1214 = vld [vmem:[%s1205 + $0x40] sm:$0xff]
    %v1215 = vld [vmem:[%s1205 + $0x48] sm:$0xff]
    %v1216 = vld [vmem:[%s1205 + $0x50] sm:$0xff]
    %v1217 = vld [vmem:[%s1205 + $0x58] sm:$0xff]
    %v1218 = vld [vmem:[%s1205 + $0x60] sm:$0xff]
    %v1219 = vld [vmem:[%s1205 + $0x68] sm:$0xff]
    %v1220 = vld [vmem:[%s1205 + $0x70] sm:$0xff]
    %v1221 = vld [vmem:[%s1205 + $0x78] sm:$0xff]
    %v1222 = vld [vmem:[%s1205 + $0x80] sm:$0xff]
    %v1223 = vld [vmem:[%s1205 + $0x88] sm:$0xff]
    %v1224 = vld [vmem:[%s1205 + $0x90] sm:$0xff]
    %v1225 = vld [vmem:[%s1205 + $0x98] sm:$0xff]
    %v1226 = vld [vmem:[%s1205 + $0xa0] sm:$0xff]
    %v1227 = vld [vmem:[%s1205 + $0xa8] sm:$0xff]
    %v1228 = vld [vmem:[%s1205 + $0xb0] sm:$0xff]
    %v1229 = vld [vmem:[%s1205 + $0xb8] sm:$0xff]
    %v1230 = vld [vmem:[%s1205 + $0xc0] sm:$0xff]
    %v1231 = vld [vmem:[%s1205 + $0xc8] sm:$0xff]
    %v1232 = vld [vmem:[%s1205 + $0xd0] sm:$0xff]
    %v1233 = vld [vmem:[%s1205 + $0xd8] sm:$0xff]
    %v1234 = vld [vmem:[%s1205 + $0xe0] sm:$0xff]
    %v1235 = vld [vmem:[%s1205 + $0xe8] sm:$0xff]
    %v1236 = vld [vmem:[%s1205 + $0xf0] sm:$0xff]
    %v1237 = vld [vmem:[%s1205 + $0xf8] sm:$0xff]
    %s1238 = scalar_lea.vmem %s5, 2
    %v1239 = vld [vmem:[%s1238] sm:$0x3]
    %v1241 = vlaneseq
    %v1242 = vshrl.u32 %v1241, 7
    %v1243 = vsub.s32 0, %v1242
    %v1244 = vrot.slane %v1239, %v1243
    %v1245 = vlaneseq
    %v1246 = vshrl.u32 %v1245, 7
    %v1247 = vsub.s32 1, %v1246
    %v1248 = vrot.slane %v1239, %v1247
    %v1283 = vunpack.c.l.b16 %v1206
    %v1284 = vunpack.c.h.b16 %v1206
    %v1285 = vunpack.c.l.b16 %v1207
    %v1286 = vunpack.c.h.b16 %v1207
    %v1287 = vunpack.c.l.b16 %v1208
    %v1288 = vunpack.c.h.b16 %v1208
    %v1289 = vunpack.c.l.b16 %v1209
    %v1290 = vunpack.c.h.b16 %v1209
    %v1291 = vunpack.c.l.b16 %v1210
    %v1292 = vunpack.c.h.b16 %v1210
    %v1293 = vunpack.c.l.b16 %v1211
    %v1294 = vunpack.c.h.b16 %v1211
    %v1295 = vunpack.c.l.b16 %v1212
    %v1296 = vunpack.c.h.b16 %v1212
    %v1297 = vunpack.c.l.b16 %v1213
    %v1298 = vunpack.c.h.b16 %v1213
    %v1299 = vunpack.c.l.b16 %v1214
    %v1300 = vunpack.c.h.b16 %v1214
    %v1301 = vunpack.c.l.b16 %v1215
    %v1302 = vunpack.c.h.b16 %v1215
    %v1303 = vunpack.c.l.b16 %v1216
    %v1304 = vunpack.c.h.b16 %v1216
    %v1305 = vunpack.c.l.b16 %v1217
    %v1306 = vunpack.c.h.b16 %v1217
    %v1307 = vunpack.c.l.b16 %v1218
    %v1308 = vunpack.c.h.b16 %v1218
    %v1309 = vunpack.c.l.b16 %v1219
    %v1310 = vunpack.c.h.b16 %v1219
    %v1311 = vunpack.c.l.b16 %v1220
    %v1312 = vunpack.c.h.b16 %v1220
    %v1313 = vunpack.c.l.b16 %v1221
    %v1314 = vunpack.c.h.b16 %v1221
    %v1315 = vunpack.c.l.b16 %v1222
    %v1316 = vunpack.c.h.b16 %v1222
    %v1317 = vunpack.c.l.b16 %v1223
    %v1318 = vunpack.c.h.b16 %v1223
    %v1319 = vunpack.c.l.b16 %v1224
    %v1320 = vunpack.c.h.b16 %v1224
    %v1321 = vunpack.c.l.b16 %v1225
    %v1322 = vunpack.c.h.b16 %v1225
    %v1323 = vunpack.c.l.b16 %v1226
    %v1324 = vunpack.c.h.b16 %v1226
    %v1325 = vunpack.c.l.b16 %v1227
    %v1326 = vunpack.c.h.b16 %v1227
    %v1327 = vunpack.c.l.b16 %v1228
    %v1328 = vunpack.c.h.b16 %v1228
    %v1329 = vunpack.c.l.b16 %v1229
    %v1330 = vunpack.c.h.b16 %v1229
    %v1331 = vunpack.c.l.b16 %v1230
    %v1332 = vunpack.c.h.b16 %v1230
    %v1333 = vunpack.c.l.b16 %v1231
    %v1334 = vunpack.c.h.b16 %v1231
    %v1335 = vunpack.c.l.b16 %v1232
    %v1336 = vunpack.c.h.b16 %v1232
    %v1337 = vunpack.c.l.b16 %v1233
    %v1338 = vunpack.c.h.b16 %v1233
    %v1339 = vunpack.c.l.b16 %v1234
    %v1340 = vunpack.c.h.b16 %v1234
    %v1341 = vunpack.c.l.b16 %v1235
    %v1342 = vunpack.c.h.b16 %v1235
    %v1343 = vunpack.c.l.b16 %v1236
    %v1344 = vunpack.c.h.b16 %v1236
    %v1345 = vunpack.c.l.b16 %v1237
    %v1346 = vunpack.c.h.b16 %v1237
    %v1347 = vpack.c.b16 %v1285, %v1283
    %v1348 = vpack.c.b16 %v1286, %v1284
    %v1349 = vpack.c.b16 %v1289, %v1287
    %v1350 = vpack.c.b16 %v1290, %v1288
    %v1351 = vpack.c.b16 %v1293, %v1291
    %v1352 = vpack.c.b16 %v1294, %v1292
    %v1353 = vpack.c.b16 %v1297, %v1295
    %v1354 = vpack.c.b16 %v1298, %v1296
    %v1355 = vpack.c.b16 %v1301, %v1299
    %v1356 = vpack.c.b16 %v1302, %v1300
    %v1357 = vpack.c.b16 %v1305, %v1303
    %v1358 = vpack.c.b16 %v1306, %v1304
    %v1359 = vpack.c.b16 %v1309, %v1307
    %v1360 = vpack.c.b16 %v1310, %v1308
    %v1361 = vpack.c.b16 %v1313, %v1311
    %v1362 = vpack.c.b16 %v1314, %v1312
    %v1363 = vpack.c.b16 %v1317, %v1315
    %v1364 = vpack.c.b16 %v1318, %v1316
    %v1365 = vpack.c.b16 %v1321, %v1319
    %v1366 = vpack.c.b16 %v1322, %v1320
    %v1367 = vpack.c.b16 %v1325, %v1323
    %v1368 = vpack.c.b16 %v1326, %v1324
    %v1369 = vpack.c.b16 %v1329, %v1327
    %v1370 = vpack.c.b16 %v1330, %v1328
    %v1371 = vpack.c.b16 %v1333, %v1331
    %v1372 = vpack.c.b16 %v1334, %v1332
    %v1373 = vpack.c.b16 %v1337, %v1335
    %v1374 = vpack.c.b16 %v1338, %v1336
    %v1375 = vpack.c.b16 %v1341, %v1339
    %v1376 = vpack.c.b16 %v1342, %v1340
    %v1377 = vpack.c.b16 %v1345, %v1343
    %v1378 = vpack.c.b16 %v1346, %v1344
    %1411 = vmatprep.subr.bf16.mxu0 %v1348
    %1412 = vmatpush1.bf16.msra.mxu0 %v1347
    %1413 = vmatprep.subr.bf16.mxu0 %v1350
    %1414 = vmatpush1.bf16.msra.mxu0 %v1349
    %1415 = vmatprep.subr.bf16.mxu0 %v1352
    %1416 = vmatpush1.bf16.msra.mxu0 %v1351
    %1417 = vmatprep.subr.bf16.mxu0 %v1354
    %1418 = vmatpush1.bf16.msra.mxu0 %v1353
    %1419 = vmatprep.subr.bf16.mxu0 %v1356
    %1420 = vmatpush1.bf16.msra.mxu0 %v1355
    %1421 = vmatprep.subr.bf16.mxu0 %v1358
    %1422 = vmatpush1.bf16.msra.mxu0 %v1357
    %1423 = vmatprep.subr.bf16.mxu0 %v1360
    %1424 = vmatpush1.bf16.msra.mxu0 %v1359
    %1425 = vmatprep.subr.bf16.mxu0 %v1362
    %1426 = vmatpush1.bf16.msra.mxu0 %v1361
    %1427 = vmatprep.subr.bf16.mxu0 %v1364
    %1428 = vmatpush1.bf16.msra.mxu0 %v1363
    %1429 = vmatprep.subr.bf16.mxu0 %v1366
    %1430 = vmatpush1.bf16.msra.mxu0 %v1365
    %1431 = vmatprep.subr.bf16.mxu0 %v1368
    %1432 = vmatpush1.bf16.msra.mxu0 %v1367
    %1433 = vmatprep.subr.bf16.mxu0 %v1370
    %1434 = vmatpush1.bf16.msra.mxu0 %v1369
    %1435 = vmatprep.subr.bf16.mxu0 %v1372
    %1436 = vmatpush1.bf16.msra.mxu0 %v1371
    %1437 = vmatprep.subr.bf16.mxu0 %v1374
    %1438 = vmatpush1.bf16.msra.mxu0 %v1373
    %1439 = vmatprep.subr.bf16.mxu0 %v1376
    %1440 = vmatpush1.bf16.msra.mxu0 %v1375
    %1441 = vmatprep.subr.bf16.mxu0 %v1378
    %1442 = vmatpush1.bf16.msra.mxu0 %v1377
    %1443 = vmatprep.mubr.bf16.mxu0 %v1190
    %1444 = vmatmul.mubr.bf16.gmra.mrb[0].mxu0 %v1189
    %v1445 = vpop.f32.mrb[0].mxu0
    %v1446 = vadd.f32 %v1244, %v1445
    %v1447 = vpop.f32.mrb[0].mxu0
    %v1448 = vadd.f32 %v1248, %v1447
    %v1449 = vpop.f32.mrb[0].mxu0
    %v1450 = vadd.f32 %v1244, %v1449
    %v1451 = vpop.f32.mrb[0].mxu0
    %v1452 = vadd.f32 %v1248, %v1451
    %1453 = vmatprep.mubr.bf16.mxu0 %v1192
    %1454 = vmatmul.mubr.bf16.gmra.mrb[0].mxu0 %v1191
    %v1455 = vpop.f32.mrb[0].mxu0
    %v1456 = vadd.f32 %v1244, %v1455
    %v1457 = vpop.f32.mrb[0].mxu0
    %v1458 = vadd.f32 %v1248, %v1457
    %v1459 = vpop.f32.mrb[0].mxu0
    %v1460 = vadd.f32 %v1244, %v1459
    %v1461 = vpop.f32.mrb[0].mxu0
    %v1462 = vadd.f32 %v1248, %v1461
    %1463 = vmatprep.mubr.bf16.mxu0 %v1194
    %1464 = vmatmul.mubr.bf16.gmra.mrb[0].mxu0 %v1193
    %v1465 = vpop.f32.mrb[0].mxu0
    %v1466 = vadd.f32 %v1244, %v1465
    %v1467 = vpop.f32.mrb[0].mxu0
    %v1468 = vadd.f32 %v1248, %v1467
    %v1469 = vpop.f32.mrb[0].mxu0
    %v1470 = vadd.f32 %v1244, %v1469
    %v1471 = vpop.f32.mrb[0].mxu0
    %v1472 = vadd.f32 %v1248, %v1471
    %1473 = vmatprep.mubr.bf16.mxu0 %v1196
    %1474 = vmatmul.mubr.bf16.gmra.mrb[0].mxu0 %v1195
    %v1475 = vpop.f32.mrb[0].mxu0
    %v1476 = vadd.f32 %v1244, %v1475
    %v1477 = vpop.f32.mrb[0].mxu0
    %v1478 = vadd.f32 %v1248, %v1477
    %v1479 = vpop.f32.mrb[0].mxu0
    %v1480 = vadd.f32 %v1244, %v1479
    %v1481 = vpop.f32.mrb[0].mxu0
    %v1482 = vadd.f32 %v1248, %v1481
    %1483 = vmatprep.mubr.bf16.mxu0 %v1198
    %1484 = vmatmul.mubr.bf16.gmra.mrb[0].mxu0 %v1197
    %v1485 = vpop.f32.mrb[0].mxu0
    %v1486 = vadd.f32 %v1244, %v1485
    %v1487 = vpop.f32.mrb[0].mxu0
    %v1488 = vadd.f32 %v1248, %v1487
    %v1489 = vpop.f32.mrb[0].mxu0
    %v1490 = vadd.f32 %v1244, %v1489
    %v1491 = vpop.f32.mrb[0].mxu0
    %v1492 = vadd.f32 %v1248, %v1491
    %1493 = vmatprep.mubr.bf16.mxu0 %v1200
    %1494 = vmatmul.mubr.bf16.gmra.mrb[0].mxu0 %v1199
    %v1495 = vpop.f32.mrb[0].mxu0
    %v1496 = vadd.f32 %v1244, %v1495
    %v1497 = vpop.f32.mrb[0].mxu0
    %v1498 = vadd.f32 %v1248, %v1497
    %v1499 = vpop.f32.mrb[0].mxu0
    %v1500 = vadd.f32 %v1244, %v1499
    %v1501 = vpop.f32.mrb[0].mxu0
    %v1502 = vadd.f32 %v1248, %v1501
    %1503 = vmatprep.mubr.bf16.mxu0 %v1202
    %1504 = vmatmul.mubr.bf16.gmra.mrb[0].mxu0 %v1201
    %v1505 = vpop.f32.mrb[0].mxu0
    %v1506 = vadd.f32 %v1244, %v1505
    %v1507 = vpop.f32.mrb[0].mxu0
    %v1508 = vadd.f32 %v1248, %v1507
    %v1509 = vpop.f32.mrb[0].mxu0
    %v1510 = vadd.f32 %v1244, %v1509
    %v1511 = vpop.f32.mrb[0].mxu0
    %v1512 = vadd.f32 %v1248, %v1511
    %1513 = vmatprep.mubr.bf16.mxu0 %v1204
    %1514 = vmatmul.mubr.bf16.gmra.mrb[0].mxu0 %v1203
    %v1515 = vpop.f32.mrb[0].mxu0
    %v1516 = vadd.f32 %v1244, %v1515
    %v1517 = vpop.f32.mrb[0].mxu0
    %v1518 = vadd.f32 %v1248, %v1517
    %v1519 = vpop.f32.mrb[0].mxu0
    %v1520 = vadd.f32 %v1244, %v1519
    %v1521 = vpop.f32.mrb[0].mxu0
    %v1522 = vadd.f32 %v1248, %v1521
    %1523 = vdwg.mxu0
    %1524 = vst [vmem:[#allocation10] sm:$0xff] %v1446
    %1525 = vst [vmem:[#allocation10 + $0x8] sm:$0xff] %v1448
    %1526 = vst [vmem:[#allocation10 + $0x10] sm:$0xff] %v1450
    %1527 = vst [vmem:[#allocation10 + $0x18] sm:$0xff] %v1452
    %1528 = vst [vmem:[#allocation10 + $0x20] sm:$0xff] %v1456
    %1529 = vst [vmem:[#allocation10 + $0x28] sm:$0xff] %v1458
    %1530 = vst [vmem:[#allocation10 + $0x30] sm:$0xff] %v1460
    %1531 = vst [vmem:[#allocation10 + $0x38] sm:$0xff] %v1462
    %1532 = vst [vmem:[#allocation10 + $0x40] sm:$0xff] %v1466
    %1533 = vst [vmem:[#allocation10 + $0x48] sm:$0xff] %v1468
    %1534 = vst [vmem:[#allocation10 + $0x50] sm:$0xff] %v1470
    %1535 = vst [vmem:[#allocation10 + $0x58] sm:$0xff] %v1472
    %1536 = vst [vmem:[#allocation10 + $0x60] sm:$0xff] %v1476
    %1537 = vst [vmem:[#allocation10 + $0x68] sm:$0xff] %v1478
    %1538 = vst [vmem:[#allocation10 + $0x70] sm:$0xff] %v1480
    %1539 = vst [vmem:[#allocation10 + $0x78] sm:$0xff] %v1482
    %1540 = vst [vmem:[#allocation10 + $0x80] sm:$0xff] %v1486
    %1541 = vst [vmem:[#allocation10 + $0x88] sm:$0xff] %v1488
    %1542 = vst [vmem:[#allocation10 + $0x90] sm:$0xff] %v1490
    %1543 = vst [vmem:[#allocation10 + $0x98] sm:$0xff] %v1492
    %1544 = vst [vmem:[#allocation10 + $0xa0] sm:$0xff] %v1496
    %1545 = vst [vmem:[#allocation10 + $0xa8] sm:$0xff] %v1498
    %1546 = vst [vmem:[#allocation10 + $0xb0] sm:$0xff] %v1500
    %1547 = vst [vmem:[#allocation10 + $0xb8] sm:$0xff] %v1502
    %1548 = vst [vmem:[#allocation10 + $0xc0] sm:$0xff] %v1506
    %1549 = vst [vmem:[#allocation10 + $0xc8] sm:$0xff] %v1508
    %1550 = vst [vmem:[#allocation10 + $0xd0] sm:$0xff] %v1510
    %1551 = vst [vmem:[#allocation10 + $0xd8] sm:$0xff] %v1512
    %1552 = vst [vmem:[#allocation10 + $0xe0] sm:$0xff] %v1516
    %1553 = vst [vmem:[#allocation10 + $0xe8] sm:$0xff] %v1518
    %1554 = vst [vmem:[#allocation10 + $0xf0] sm:$0xff] %v1520
    %1555 = vst [vmem:[#allocation10 + $0xf8] sm:$0xff] %v1522
    // Predicated region
    $region42: #{tpu_custom_call.1} parent=1 // pred_check
      _
    $region43: #{tpu_custom_call.1} parent=1 // pred_check_branch
      %1557 = sbr.rel (0) target = $region45
    $region44: #{tpu_custom_call.1} parent=1 // pred_region
      %s1559 = ssub.s32 4096, 4096
      %1560 = vsyncadd [#allocation4], %s1559
      %s1561 = sshll.u32 [#allocation10], 4
      %s1562 = int_to_ptr.vmem [resolvable:$true] %s1561
      %1567 = dma.vmem_to_hbm [thread:$0]  %s1562, 4096, %s6, [#allocation4], 256, 256, 16
    $region45: #{tpu_custom_call.1} parent=1 // pred_fallthru
      _
    // Predicated region
    $region46: #{tpu_custom_call.1} parent=1 // pred_check
      _
    $region47: #{tpu_custom_call.1} parent=1 // pred_check_branch
      %1569 = sbr.rel (0) target = $region49
    $region48: #{tpu_custom_call.1} parent=1 // pred_region
      %1570 = dma.done [#allocation4], 4096
    $region49: #{tpu_custom_call.1} parent=1 // pred_fallthru
      _
    %1571 = vsyncpa [#allocation3], 1
    %1572 = vsyncpa [#allocation6], 1
    %1573 = vsyncpa [#allocation9], 1
    %1574 = vsyncpa [#allocation4], 1

</llo_original>
